<compile_context>
chip_gen: v7x
topology: tpu7x:2x2x1
jax: 0.10.0
libtpu: 0.0.40
codegen_flags: <defaults>
</compile_context>

<pallas_src>
import functools

import jax
import jax.numpy as jnp
from jax.experimental import pallas as pl
from jax.experimental.pallas import tpu as pltpu


# ---------------------------------------------------------------------------
# Kernels.  Operands arrive in their native (f32) dtype and are cast to bf16
# inside the kernel, hidden under the MXU work.
# ---------------------------------------------------------------------------

def _kernel_single_step(x_ref, w_ref, b_ref, o_ref):
    """K collapsed to one grid step: y = x @ w + b, single lane-dense store."""
    y = jnp.dot(x_ref[...].astype(jnp.bfloat16),
                w_ref[...].astype(jnp.bfloat16),
                preferred_element_type=jnp.float32)
    o_ref[...] = (y + b_ref[...]).astype(o_ref.dtype)


def _kernel_f32_out(x_ref, w_ref, b_ref, o_ref):
    """Tiled K, f32 output: accumulate directly into the resident output tile
    (output index_map ignores k) -- no scratch accumulator, no epilogue copy."""
    k = pl.program_id(2)
    part = jnp.dot(x_ref[...].astype(jnp.bfloat16),
                   w_ref[...].astype(jnp.bfloat16),
                   preferred_element_type=jnp.float32)

    @pl.when(k == 0)
    def _first():
        o_ref[...] = part + b_ref[...]

    @pl.when(k > 0)
    def _rest():
        o_ref[...] += part


def _kernel_narrow_out(x_ref, w_ref, b_ref, o_ref, acc_ref):
    """Tiled K, narrow (e.g. bf16) output: f32 scratch accumulator + epilogue."""
    k = pl.program_id(2)

    @pl.when(k == 0)
    def _init():
        acc_ref[...] = jnp.zeros_like(acc_ref)

    acc_ref[...] += jnp.dot(x_ref[...].astype(jnp.bfloat16),
                            w_ref[...].astype(jnp.bfloat16),
                            preferred_element_type=jnp.float32)

    @pl.when(k == pl.num_programs(2) - 1)
    def _finalize():
        o_ref[...] = (acc_ref[...] + b_ref[...]).astype(o_ref.dtype)


# ---------------------------------------------------------------------------
# Tile selection (generation-aware VMEM budget).
# ---------------------------------------------------------------------------

def _vmem_capacity_bytes():
    try:
        return int(pltpu.get_tpu_info().vmem_capacity_bytes)
    except Exception:
        return 64 << 20  # conservative default = v7x per-TensorCore VMEM


def _divisor_tiles(dim, align, cap):
    """Aligned divisors of `dim` up to `cap`, largest first.  Falls back to the
    full dim (always a legal block shape) when `dim` is not alignable."""
    if dim % align != 0:
        return [dim]
    return [t for t in range(min(dim, cap), align - 1, -align) if dim % t == 0]


def _choose_tiles(B, D_in, D_out, out_itemsize, out_is_f32, budget):
    """Pick (TM, TN, TK).  Priorities (per perf review):
       1) >= 2 independent (i, j) output tiles (v7x has 2 TensorCores),
       2) fewest total grid steps (~0.35 us pipeline overhead per step),
       3) fewest K steps (collapsed K removes accumulator RMW traffic),
       4) largest tiles -- all under the generation-aware VMEM budget."""
    if B % 16 == 0:                              # bf16 packs 16 rows / sublane
        tm_c = _divisor_tiles(B, 16, 1024)
    else:
        tm_c = _divisor_tiles(B, 8, 1024)
    tn_c = _divisor_tiles(D_out, 128, 1024)      # lane-dense output stores
    tk_c = _divisor_tiles(D_in, 128, 4096)       # large K tiles / full collapse

    def fits(tm, tn, tk):
        fb = 2 * (tm * tk + tk * tn) * 4         # double-buffered f32 x / W
        fb += 2 * 8 * tn * 4                     # bias block (8-sublane padded)
        fb += 2 * tm * tn * out_itemsize         # double-buffered output tile
        if (not out_is_f32) and tk < D_in:
            fb += tm * tn * 4                    # f32 scratch accumulator
        return fb <= budget

    best_key, best = None, None
    for tk in tk_c:
        for tn in tn_c:
            for tm in tm_c:
                if not fits(tm, tn, tk):
                    continue
                gi, gj, gk = B // tm, D_out // tn, D_in // tk
                key = (0 if gi * gj >= 2 else 1,   # feed both v7x TensorCores
                       gi * gj * gk,               # amortize per-step overhead
                       gk,                         # prefer collapsed K
                       -(tm * tn * tk))            # then biggest tiles
                if best_key is None or key < best_key:
                    best_key, best = key, (tm, tn, tk)
    if best is None:                               # pathological: nothing fits
        best = (tm_c[-1], tn_c[-1], tk_c[-1])
    return best


# ---------------------------------------------------------------------------
# Wrapper.
# ---------------------------------------------------------------------------

@functools.partial(jax.jit, static_argnames=("num_devices", "out_dtype"))
def data_parallel_linear(x, weight_t, bias, *, num_devices=1, out_dtype=None):
    """DataParallel(Linear)(x): y = x @ weight_t + bias.

    x:        (B, D_in)      float32 (or bfloat16)
    weight_t: (D_in, D_out)  torch Linear weight (D_out, D_in), transposed
    bias:     (D_out,)
    num_devices: len(device_ids) of the wrapped nn.DataParallel.  Its batch
      scatter/gather is math-identical to the full-batch op; the batch grid
      axis below is marked "parallel" (single-chip analogue of the split).
    out_dtype: output dtype (default x.dtype).  Pass jnp.bfloat16 to halve
      output writeback traffic when f32 results are not required.
    """
    B, D_in = x.shape
    D_out = weight_t.shape[1]
    assert weight_t.shape[0] == D_in and bias.shape == (D_out,)
    assert B % num_devices == 0, "batch must split evenly across device shards"

    out_dtype = x.dtype if out_dtype is None else jnp.dtype(out_dtype)
    out_is_f32 = jnp.dtype(out_dtype) == jnp.dtype(jnp.float32)
    out_sz = jnp.dtype(out_dtype).itemsize

    cap = _vmem_capacity_bytes()
    budget = max(8 << 20, (cap * 3) // 8)   # ~24 MiB on v7x, ~48 MiB v5e/v6e

    TM, TN, TK = _choose_tiles(B, D_in, D_out, out_sz, out_is_f32, budget)
    gi, gj, gk = B // TM, D_out // TN, D_in // TK
    grid = (gi, gj, gk)

    if gk == 1:
        kernel, scratch = _kernel_single_step, []
    elif out_is_f32:
        kernel, scratch = _kernel_f32_out, []
    else:
        kernel, scratch = _kernel_narrow_out, [pltpu.VMEM((TM, TN), jnp.float32)]

    fp = (2 * (TM * TK + TK * TN) * 4 + 2 * 8 * TN * 4 + 2 * TM * TN * out_sz
          + (TM * TN * 4 if scratch else 0))
    vmem_limit = int(min(max(2 * fp, 16 << 20), (cap * 3) // 4))

    b_row = bias.reshape(1, D_out).astype(jnp.float32)

    return pl.pallas_call(
        kernel,
        out_shape=jax.ShapeDtypeStruct((B, D_out), out_dtype),
        grid=grid,
        in_specs=[
            pl.BlockSpec((TM, TK), lambda i, j, k: (i, k)),   # activation tile
            pl.BlockSpec((TK, TN), lambda i, j, k: (k, j)),   # weight panel
            pl.BlockSpec((1, TN), lambda i, j, k: (0, j)),    # bias slice
        ],
        out_specs=pl.BlockSpec((TM, TN), lambda i, j, k: (i, j)),
        scratch_shapes=scratch,
        compiler_params=pltpu.CompilerParams(
            dimension_semantics=("parallel", "parallel", "arbitrary"),
            vmem_limit_bytes=vmem_limit,
        ),
    )(x, weight_t, b_row)


if __name__ == "__main__":
    # Wrapped layer ~ nn.Linear(512, 512), device_ids = [0, 1], batch = 256.
    B, D_in, D_out = 256, 512, 512
    num_devices = 2  # len(device_ids)

    key = jax.random.PRNGKey(0)
    kx, kw, kb = jax.random.split(key, 3)

    x = jax.random.normal(kx, (B, D_in), dtype=jnp.float32)
    # torch Linear weight is (D_out, D_in); store it transposed for the kernel.
    weight = jax.random.normal(kw, (D_out, D_in), dtype=jnp.float32) * 0.05
    bias = jax.random.normal(kb, (D_out,), dtype=jnp.float32) * 0.1
    weight_t = weight.T  # (D_in, D_out)

    out = data_parallel_linear(x, weight_t, bias, num_devices=num_devices)
    out = jax.block_until_ready(out)

    # Reference with the same bf16 operand rounding (f32 accumulation),
    # matching the math of DataParallel(Linear)(x).
    ref = (x.astype(jnp.bfloat16).astype(jnp.float32)
           @ weight_t.astype(jnp.bfloat16).astype(jnp.float32)
           + bias.reshape(1, D_out))
    assert out.shape == (B, D_out) and out.dtype == jnp.float32
    assert jnp.allclose(out, ref, atol=5e-3, rtol=5e-3), float(
        jnp.max(jnp.abs(out - ref)))

    # Optional bf16 output path (halves output writeback traffic).
    out_bf16 = jax.block_until_ready(
        data_parallel_linear(x, weight_t, bias, num_devices=num_devices,
                             out_dtype=jnp.bfloat16))
    assert out_bf16.dtype == jnp.bfloat16
    assert jnp.allclose(out_bf16.astype(jnp.float32), ref, atol=3e-2, rtol=3e-2)

    # TODO(synk): true multi-chip scatter/gather (nn.DataParallel's cross-device
    # copies) is not modeled; the parallel batch grid axis reproduces the math.
    print("KERNEL_OK")
</pallas_src>

<mosaic_0001>
module attributes {stable_mosaic.version = 11 : i64} {
  func.func @_kernel_single_step(%arg0: i32, %arg1: i32, %arg2: i32, %arg3: memref<128x512xf32, #tpu.memory_space<vmem>>, %arg4: memref<512x512xf32, #tpu.memory_space<vmem>>, %arg5: memref<1x512xf32, #tpu.memory_space<vmem>>, %arg6: memref<128x512xf32, #tpu.memory_space<vmem>>) attributes {dimension_semantics = [#tpu.dimension_semantics<parallel>, #tpu.dimension_semantics<parallel>, #tpu.dimension_semantics<arbitrary>], iteration_bounds = array<i64: 2, 1, 1>, scalar_prefetch = 0 : i64, scratch_operands = 0 : i64, tpu.core_type = #tpu.core_type<tc>, window_params = [{transform_indices = @transform_0, window_bounds = array<i64: 128, 512>}, {transform_indices = @transform_1, window_bounds = array<i64: 512, 512>}, {transform_indices = @transform_2, window_bounds = array<i64: 1, 512>}, {transform_indices = @transform_3, window_bounds = array<i64: 128, 512>}]} {
    %c0 = arith.constant 0 : index
    %c0_0 = arith.constant 0 : index
    %0 = vector.load %arg3[%c0, %c0_0] : memref<128x512xf32, #tpu.memory_space<vmem>>, vector<128x512xf32>
    %1 = arith.truncf %0 : vector<128x512xf32> to vector<128x512xbf16>
    %c0_1 = arith.constant 0 : index
    %c0_2 = arith.constant 0 : index
    %2 = vector.load %arg4[%c0_1, %c0_2] : memref<512x512xf32, #tpu.memory_space<vmem>>, vector<512x512xf32>
    %3 = arith.truncf %2 : vector<512x512xf32> to vector<512x512xbf16>
    %cst = arith.constant dense<0.000000e+00> : vector<128x512xf32>
    %4 = tpu.matmul %1, %3, %cst {dimension_numbers = #tpu.dot_dimension_numbers<[1], [0], [0], [1], [0, 0, 1, 1], [], []>} : vector<128x512xbf16>, vector<512x512xbf16>, vector<128x512xf32> -> vector<128x512xf32>
    %c0_3 = arith.constant 0 : index
    %c0_4 = arith.constant 0 : index
    %5 = vector.load %arg5[%c0_3, %c0_4] : memref<1x512xf32, #tpu.memory_space<vmem>>, vector<1x512xf32>
    %6 = vector.broadcast %5 : vector<1x512xf32> to vector<128x512xf32>
    %7 = arith.addf %4, %6 : vector<128x512xf32>
    %c0_5 = arith.constant 0 : index
    %c0_6 = arith.constant 0 : index
    %8 = vector.load %arg6[%c0_5, %c0_6] : memref<128x512xf32, #tpu.memory_space<vmem>>, vector<128x512xf32>
    tpu.vector_store %arg6[%c0_5, %c0_6], %7 {strides = array<i32>} : memref<128x512xf32, #tpu.memory_space<vmem>>, vector<128x512xf32>,
    return
  }
  func.func @transform_0(%arg0: i32, %arg1: i32, %arg2: i32) -> (i32, i32) {
    %c0_i32 = arith.constant 0 : i32
    return %arg0, %arg2 : i32, i32
  }
  func.func @transform_1(%arg0: i32, %arg1: i32, %arg2: i32) -> (i32, i32) {
    %c0_i32 = arith.constant 0 : i32
    return %arg2, %arg1 : i32, i32
  }
  func.func @transform_2(%arg0: i32, %arg1: i32, %arg2: i32) -> (i32, i32) {
    %c0_i32 = arith.constant 0 : i32
    %c0_i32_0 = arith.constant 0 : i32
    return %c0_i32, %arg1 : i32, i32
  }
  func.func @transform_3(%arg0: i32, %arg1: i32, %arg2: i32) -> (i32, i32) {
    %c0_i32 = arith.constant 0 : i32
    return %arg0, %arg1 : i32, i32
  }
}

</mosaic_0001>

<llo_original>
// kernel: data_parallel_linear.1
$region0: #{data_parallel_linear.1}
  #allocation0 [shape = 'u32[]', space=smem, size = 0x4, offset = 0x4, fixed_abs, tag = 'smem constant byte address 0x4 - core index']
  #allocation1 [shape = 'u32[144,128]{1,0:T(1,128)}', space=vmem, size = 0x12000, scoped, tag = 'internal scratch']
  %s0 = inlined_call_operand.hbm [shape: f32[256,512], index: 0, kind: input, shape index: {}]
  %s1 = inlined_call_operand.hbm [shape: f32[512,512], index: 1, kind: input, shape index: {}]
  %s2 = inlined_call_operand.vmem [shape: f32[1,512], index: 2, kind: input, shape index: {}]
  %s3 = inlined_call_operand.hbm [shape: f32[256,512], index: 3, kind: output, shape index: {}]
  %s4 = sld [smem:[#allocation0]]
  $region53: #{data_parallel_linear.1} parent=0
    _
  %s6 = ssub.s32 1, %s4
  %s7 = scalar_select 0, %s6, %s4
  $region1: #{data_parallel_linear.1} parent=0
    #allocation2 [shape = 'u8[524288]{0}', space=vmem, size = 0x80000, scoped, tag = 'input window, operand 0']
    #allocation3 [shape = 's32[2]{0}', space=sflag, size = 0x8, scoped, tag = 'scoped memory for data_parallel_linear.1']
    #allocation4 [shape = 's32[2]{0}', space=sflag, size = 0x8, scoped, tag = 'scoped memory for data_parallel_linear.1']
    #allocation5 [shape = 'u8[1048576]{0}', space=vmem, size = 0x100000, scoped, tag = 'input window, operand 1, single buffered']
    #allocation6 [shape = 's32[1]{0}', space=sflag, size = 0x4, scoped, tag = 'scoped memory for data_parallel_linear.1']
    #allocation7 [shape = 'u8[524288]{0}', space=vmem, size = 0x80000, scoped, tag = 'output window, operand 0']
    %8 = vsyncpa [#allocation3], 0
    %s9 = scalar_lea.sflag [#allocation3], 1
    %10 = vsyncpa %s9, 0
    %11 = vsyncpa [#allocation6], 0
    %12 = vsyncpa [#allocation4], 0
    %s13 = scalar_lea.sflag [#allocation4], 1
    %14 = vsyncpa %s13, 0
    loop: start=0, step=1, limit=4
    $region2: #{data_parallel_linear.1} parent=1 // loop_pre_header
      _
    $region3: #{data_parallel_linear.1} parent=1 // loop_header
      %s16 = sphi 0, %s20
      %p17 = scmp.ge.s32.totalorder %s16, 4
      %s23 = sphi 0, %s42
      %s24 = sphi 0, %s38
      %s25 = sphi 0, %s34
      %s26 = sphi 0, %s23
      %s27 = sphi 0, %s24
      %s28 = sphi 0, %s25
      %s29 = sphi 0, %s26
      %s30 = sphi 0, %s27
      %s31 = sphi 0, %s28
      %s47 = sphi 0, %s49
      %s50 = sphi 0, %s47
      %s51 = sphi 0, %s50
      %s67 = sphi 0, %s51
      %s75 = sphi 0, %s77
      %s78 = sphi 0, %s75
      %s79 = sphi 0, %s78
      %s95 = sphi 0, %s79
      %s101 = sphi 0, %s103
      %s104 = sphi 0, %s101
      %s105 = sphi 0, %s104
      %s121 = sphi 0, %s105
      %s129 = sphi 0, %s131
      %s132 = sphi 0, %s129
      %s133 = sphi 0, %s132
      %s149 = sphi 0, %s133
    $region4: #{data_parallel_linear.1} parent=1 // loop_header_branch
      %19 = sbr.rel (%p17) target = $region8
    $region5: #{data_parallel_linear.1} parent=1 // loop_body
      %s21 = ssub.s32 %s16, 1
      %s22 = ssub.s32 %s16, 2
      %s32 = sadd.s32 1, %s25
      %p33 = scmp.ge.s32.totalorder %s32, 1
      %s34 = scalar_select %p33, 0, %s32
      %s35 = sadd.s32 1, %s24
      %s36 = scalar_select %p33, %s35, %s24
      %p37 = scmp.ge.s32.totalorder %s36, 1
      %s38 = scalar_select %p37, 0, %s36
      %s39 = sadd.s32 1, %s23
      %s40 = scalar_select %p37, %s39, %s23
      %p41 = scmp.ge.s32.totalorder %s40, 2
      %s42 = scalar_select %p41, 0, %s40
      %s43 = ssub.s32 %s23, %s42
      %s44 = ssub.s32 %s25, %s34
      %s45 = sor.u32 %s43, %s44
      %p46 = scmp.eq.s32.totalorder %s45, 0
      %s48 = sadd.s32 %s47, 1
      %s49 = scalar_select %p46, %s47, %s48
      %p52 = pneg %p46
      %p53 = scmp.eq.s32.totalorder %s16, 1
      %p54 = por %p52, %p53
      %p55 = scmp.ne.s32.totalorder %s47, %s50
      %p56 = scmp.eq.s32.totalorder %s16, 0
      %p57 = por %p55, %p56
      %p58 = scmp.ne.s32.totalorder %s47, %s50
      %p59 = scmp.eq.s32.totalorder %s21, 1
      %p60 = por %p58, %p59
      %p61 = scmp.ne.s32.totalorder %s50, %s51
      %p62 = scmp.eq.s32.totalorder %s21, 0
      %p63 = por %p61, %p62
      %p64 = scmp.ne.s32.totalorder %s50, %s51
      %p65 = scmp.eq.s32.totalorder %s22, 1
      %p66 = por %p64, %p65
      %p68 = scmp.ne.s32.totalorder %s51, %s67
      %p69 = scmp.eq.s32.totalorder %s22, 0
      %p70 = por %p68, %p69
      %s71 = ssub.s32 %s25, %s34
      %s72 = ssub.s32 %s24, %s38
      %s73 = sor.u32 %s71, %s72
      %p74 = scmp.eq.s32.totalorder %s73, 0
      %s76 = sadd.s32 %s75, 1
      %s77 = scalar_select %p74, %s75, %s76
      %p80 = pneg %p74
      %p81 = scmp.eq.s32.totalorder %s16, 1
      %p82 = por %p80, %p81
      %p83 = scmp.ne.s32.totalorder %s75, %s78
      %p84 = scmp.eq.s32.totalorder %s16, 0
      %p85 = por %p83, %p84
      %p86 = scmp.ne.s32.totalorder %s75, %s78
      %p87 = scmp.eq.s32.totalorder %s21, 1
      %p88 = por %p86, %p87
      %p89 = scmp.ne.s32.totalorder %s78, %s79
      %p90 = scmp.eq.s32.totalorder %s21, 0
      %p91 = por %p89, %p90
      %p92 = scmp.ne.s32.totalorder %s78, %s79
      %p93 = scmp.eq.s32.totalorder %s22, 1
      %p94 = por %p92, %p93
      %p96 = scmp.ne.s32.totalorder %s79, %s95
      %p97 = scmp.eq.s32.totalorder %s22, 0
      %p98 = por %p96, %p97
      %s99 = ssub.s32 %s24, %s38
      %p100 = scmp.eq.s32.totalorder %s99, 0
      %s102 = sadd.s32 %s101, 1
      %s103 = scalar_select %p100, %s101, %s102
      %p106 = pneg %p100
      %p107 = scmp.eq.s32.totalorder %s16, 1
      %p108 = por %p106, %p107
      %p109 = scmp.ne.s32.totalorder %s101, %s104
      %p110 = scmp.eq.s32.totalorder %s16, 0
      %p111 = por %p109, %p110
      %p112 = scmp.ne.s32.totalorder %s101, %s104
      %p113 = scmp.eq.s32.totalorder %s21, 1
      %p114 = por %p112, %p113
      %p115 = scmp.ne.s32.totalorder %s104, %s105
      %p116 = scmp.eq.s32.totalorder %s21, 0
      %p117 = por %p115, %p116
      %p118 = scmp.ne.s32.totalorder %s104, %s105
      %p119 = scmp.eq.s32.totalorder %s22, 1
      %p120 = por %p118, %p119
      %p122 = scmp.ne.s32.totalorder %s105, %s121
      %p123 = scmp.eq.s32.totalorder %s22, 0
      %p124 = por %p122, %p123
      %s125 = ssub.s32 %s23, %s42
      %s126 = ssub.s32 %s24, %s38
      %s127 = sor.u32 %s125, %s126
      %p128 = scmp.eq.s32.totalorder %s127, 0
      %s130 = sadd.s32 %s129, 1
      %s131 = scalar_select %p128, %s129, %s130
      %p134 = pneg %p128
      %p135 = scmp.eq.s32.totalorder %s16, 1
      %p136 = por %p134, %p135
      %p137 = scmp.ne.s32.totalorder %s129, %s132
      %p138 = scmp.eq.s32.totalorder %s16, 0
      %p139 = por %p137, %p138
      %p140 = scmp.ne.s32.totalorder %s129, %s132
      %p141 = scmp.eq.s32.totalorder %s21, 1
      %p142 = por %p140, %p141
      %p143 = scmp.ne.s32.totalorder %s132, %s133
      %p144 = scmp.eq.s32.totalorder %s21, 0
      %p145 = por %p143, %p144
      %p146 = scmp.ne.s32.totalorder %s132, %s133
      %p147 = scmp.eq.s32.totalorder %s22, 1
      %p148 = por %p146, %p147
      %p150 = scmp.ne.s32.totalorder %s133, %s149
      %p151 = scmp.eq.s32.totalorder %s22, 0
      %p152 = por %p150, %p151
      %p153 = scmp.le.s32.totalorder 1, %s16
      %p154 = scmp.lt.s32.totalorder %s16, 3
      %p155 = pnand %p153, %p154
      %p156 = pneg %p155
      // Predicated region
      $region9: #{data_parallel_linear.1} parent=5 // pred_check
        _
      $region10: #{data_parallel_linear.1} parent=5 // pred_check_branch
        %158 = sbr.rel (%p155) target = $region12
      $region11: #{data_parallel_linear.1} parent=5 // pred_region
        %s159 = ssub.s32 %s16, 1
        // Predicated region
        $region13: #{data_parallel_linear.1} parent=11 // pred_check
          %p160 = pneg %p91
        $region14: #{data_parallel_linear.1} parent=11 // pred_check_branch
          %162 = sbr.rel (%p160) target = $region16
        $region15: #{data_parallel_linear.1} parent=11 // pred_region
          %s163 = smul.u32 64, %s28
          %s164 = smul.u32 4, %s27
          %s166 = ssub.s32 32768, 32768
          %167 = vsyncadd [#allocation6], %s166
          %s168 = smul.addr %s163, 4
          %s169 = sadd.s32 %s164, %s168
          %s170 = smul.addr %s169, 128
          %s171 = scalar_lea.hbm %s1, %s170
          %s172 = sshll.u32 [#allocation5], 4
          %s173 = int_to_ptr.vmem [resolvable:$true] %s172
          %178 = dma.hbm_to_vmem [thread:$0]  %s171, 32768, %s173, [#allocation6], 512, 512, 32
        $region16: #{data_parallel_linear.1} parent=11 // pred_fallthru
          _
        // Predicated region
        $region17: #{data_parallel_linear.1} parent=11 // pred_check
          %p179 = pneg %p117
        $region18: #{data_parallel_linear.1} parent=11 // pred_check_branch
          %181 = sbr.rel (%p179) target = $region20
        $region19: #{data_parallel_linear.1} parent=11 // pred_region
          %s182 = smul.u32 4, %s27
          %p183 = scmp.lt.s32.totalorder %s182, 3
          %s184 = scalar_select %p183, %s182, 3
          %s185 = scalar_lea.vmem %s2, %s184
          %s186 = smul.u32 4, %s27
        $region20: #{data_parallel_linear.1} parent=11 // pred_fallthru
          _
      $region12: #{data_parallel_linear.1} parent=5 // pred_fallthru
        _
      %p187 = scmp.lt.s32.totalorder %s16, 2
      // Predicated region
      $region21: #{data_parallel_linear.1} parent=5 // pred_check
        %p188 = pneg %p187
      $region22: #{data_parallel_linear.1} parent=5 // pred_check_branch
        %190 = sbr.rel (%p188) target = $region24
      $region23: #{data_parallel_linear.1} parent=5 // pred_region
        // Predicated region
        $region25: #{data_parallel_linear.1} parent=23 // pred_check
          %p191 = pneg %p57
        $region26: #{data_parallel_linear.1} parent=23 // pred_check_branch
          %193 = sbr.rel (%p191) target = $region28
        $region27: #{data_parallel_linear.1} parent=23 // pred_region
          %s194 = sand.u32 %s47, 1
          %s195 = scalar_lea.sflag [#allocation3], %s194
          %s196 = sand.u32 %s47, 1
          %s197 = smul.addr %s196, 512
          %s198 = scalar_lea.vmem [#allocation2], %s197
          %s199 = smul.u32 16, %s23
          %s200 = smul.u32 4, %s25
          %s202 = ssub.s32 8192, 8192
          %203 = vsyncadd %s195, %s202
          %s204 = smul.addr %s199, 4
          %s205 = sadd.s32 %s200, %s204
          %s206 = smul.addr %s205, 128
          %s207 = scalar_lea.hbm %s0, %s206
          %s208 = sshll.u32 %s198, 4
          %s209 = int_to_ptr.vmem [resolvable:$true] %s208
          %214 = dma.hbm_to_vmem [thread:$0]  %s207, 8192, %s209, %s195, 512, 512, 32
        $region28: #{data_parallel_linear.1} parent=23 // pred_fallthru
          _
      $region24: #{data_parallel_linear.1} parent=5 // pred_fallthru
        _
      %p215 = scmp.le.s32.totalorder 1, %s16
      %p216 = scmp.lt.s32.totalorder %s16, 3
      %p217 = pnand %p215, %p216
      %p218 = pneg %p217
      // Predicated region
      $region29: #{data_parallel_linear.1} parent=5 // pred_check
        _
      $region30: #{data_parallel_linear.1} parent=5 // pred_check_branch
        %220 = sbr.rel (%p217) target = $region32
      $region31: #{data_parallel_linear.1} parent=5 // pred_region
        %s221 = ssub.s32 %s16, 1
        %s222 = sand.u32 %s50, 1
        %s223 = scalar_lea.sflag [#allocation3], %s222
        %s224 = sand.u32 %s50, 1
        %s225 = smul.addr %s224, 512
        %s226 = scalar_lea.vmem [#allocation2], %s225
        // Predicated region
        $region33: #{data_parallel_linear.1} parent=31 // pred_check
          %p227 = pneg %p63
        $region34: #{data_parallel_linear.1} parent=31 // pred_check_branch
          %229 = sbr.rel (%p227) target = $region36
        $region35: #{data_parallel_linear.1} parent=31 // pred_region
          %230 = dma.done %s223, 8192
        $region36: #{data_parallel_linear.1} parent=31 // pred_fallthru
          _
        // Predicated region
        $region37: #{data_parallel_linear.1} parent=31 // pred_check
          %p231 = pneg %p91
        $region38: #{data_parallel_linear.1} parent=31 // pred_check_branch
          %233 = sbr.rel (%p231) target = $region40
        $region39: #{data_parallel_linear.1} parent=31 // pred_region
          %234 = dma.done [#allocation6], 32768
        $region40: #{data_parallel_linear.1} parent=31 // pred_fallthru
          _
        %s235 = sand.u32 %s50, 1
        %s236 = scalar_lea.sflag [#allocation3], %s235
        %s237 = sand.u32 %s50, 1
        %s238 = smul.addr %s237, 512
        %s239 = scalar_lea.vmem [#allocation2], %s238
        %p240 = pneg %p63
        %p241 = pneg %p60
        %p242 = pneg %p91
        %p243 = pneg %p88
        %s244 = smul.u32 4, %s27
        %p245 = scmp.lt.s32.totalorder %s244, 3
        %s246 = scalar_select %p245, %s244, 3
        %s247 = scalar_lea.vmem %s2, %s246
        %p248 = pneg %p117
        %p249 = pneg %p114
        %p250 = pneg %p145
        %p251 = pneg %p142
        %s252 = sand.u32 %s132, 1
        %s253 = scalar_lea.sflag [#allocation4], %s252
        %s254 = sand.u32 %s132, 1
        %s255 = smul.addr %s254, 512
        %s256 = scalar_lea.vmem [#allocation7], %s255
        %s257 = smul.u32 16, %s26
        %s258 = smul.u32 4, %s28
        %s259 = smul.u32 64, %s28
        %s260 = smul.u32 4, %s27
        %s261 = smul.u32 4, %s27
        %p262 = scmp.lt.s32.totalorder %s261, 3
        %s263 = scalar_select %p262, %s261, 3
        %s264 = scalar_lea.vmem %s2, %s263
        %s265 = smul.u32 4, %s27
        %s266 = smul.u32 16, %s26
        %s267 = smul.u32 4, %s27
        %v268 = vld [vmem:[%s226] sm:$0xff]
        %v269 = vld [vmem:[%s226 + $0x8] sm:$0xff]
        %v270 = vld [vmem:[%s226 + $0x10] sm:$0xff]
        %v271 = vld [vmem:[%s226 + $0x18] sm:$0xff]
        %v272 = vld [vmem:[%s226 + $0x20] sm:$0xff]
        %v273 = vld [vmem:[%s226 + $0x28] sm:$0xff]
        %v274 = vld [vmem:[%s226 + $0x30] sm:$0xff]
        %v275 = vld [vmem:[%s226 + $0x38] sm:$0xff]
        %v276 = vld [vmem:[%s226 + $0x40] sm:$0xff]
        %v277 = vld [vmem:[%s226 + $0x48] sm:$0xff]
        %v278 = vld [vmem:[%s226 + $0x50] sm:$0xff]
        %v279 = vld [vmem:[%s226 + $0x58] sm:$0xff]
        %v280 = vld [vmem:[%s226 + $0x60] sm:$0xff]
        %v281 = vld [vmem:[%s226 + $0x68] sm:$0xff]
        %v282 = vld [vmem:[%s226 + $0x70] sm:$0xff]
        %v283 = vld [vmem:[%s226 + $0x78] sm:$0xff]
        %v284 = vld [vmem:[%s226 + $0x80] sm:$0xff]
        %v285 = vld [vmem:[%s226 + $0x88] sm:$0xff]
        %v286 = vld [vmem:[%s226 + $0x90] sm:$0xff]
        %v287 = vld [vmem:[%s226 + $0x98] sm:$0xff]
        %v288 = vld [vmem:[%s226 + $0xa0] sm:$0xff]
        %v289 = vld [vmem:[%s226 + $0xa8] sm:$0xff]
        %v290 = vld [vmem:[%s226 + $0xb0] sm:$0xff]
        %v291 = vld [vmem:[%s226 + $0xb8] sm:$0xff]
        %v292 = vld [vmem:[%s226 + $0xc0] sm:$0xff]
        %v293 = vld [vmem:[%s226 + $0xc8] sm:$0xff]
        %v294 = vld [vmem:[%s226 + $0xd0] sm:$0xff]
        %v295 = vld [vmem:[%s226 + $0xd8] sm:$0xff]
        %v296 = vld [vmem:[%s226 + $0xe0] sm:$0xff]
        %v297 = vld [vmem:[%s226 + $0xe8] sm:$0xff]
        %v298 = vld [vmem:[%s226 + $0xf0] sm:$0xff]
        %v299 = vld [vmem:[%s226 + $0xf8] sm:$0xff]
        %v300 = vld [vmem:[%s226 + $0x100] sm:$0xff]
        %v301 = vld [vmem:[%s226 + $0x108] sm:$0xff]
        %v302 = vld [vmem:[%s226 + $0x110] sm:$0xff]
        %v303 = vld [vmem:[%s226 + $0x118] sm:$0xff]
        %v304 = vld [vmem:[%s226 + $0x120] sm:$0xff]
        %v305 = vld [vmem:[%s226 + $0x128] sm:$0xff]
        %v306 = vld [vmem:[%s226 + $0x130] sm:$0xff]
        %v307 = vld [vmem:[%s226 + $0x138] sm:$0xff]
        %v308 = vld [vmem:[%s226 + $0x140] sm:$0xff]
        %v309 = vld [vmem:[%s226 + $0x148] sm:$0xff]
        %v310 = vld [vmem:[%s226 + $0x150] sm:$0xff]
        %v311 = vld [vmem:[%s226 + $0x158] sm:$0xff]
        %v312 = vld [vmem:[%s226 + $0x160] sm:$0xff]
        %v313 = vld [vmem:[%s226 + $0x168] sm:$0xff]
        %v314 = vld [vmem:[%s226 + $0x170] sm:$0xff]
        %v315 = vld [vmem:[%s226 + $0x178] sm:$0xff]
        %v316 = vld [vmem:[%s226 + $0x180] sm:$0xff]
        %v317 = vld [vmem:[%s226 + $0x188] sm:$0xff]
        %v318 = vld [vmem:[%s226 + $0x190] sm:$0xff]
        %v319 = vld [vmem:[%s226 + $0x198] sm:$0xff]
        %v320 = vld [vmem:[%s226 + $0x1a0] sm:$0xff]
        %v321 = vld [vmem:[%s226 + $0x1a8] sm:$0xff]
        %v322 = vld [vmem:[%s226 + $0x1b0] sm:$0xff]
        %v323 = vld [vmem:[%s226 + $0x1b8] sm:$0xff]
        %v324 = vld [vmem:[%s226 + $0x1c0] sm:$0xff]
        %v325 = vld [vmem:[%s226 + $0x1c8] sm:$0xff]
        %v326 = vld [vmem:[%s226 + $0x1d0] sm:$0xff]
        %v327 = vld [vmem:[%s226 + $0x1d8] sm:$0xff]
        %v328 = vld [vmem:[%s226 + $0x1e0] sm:$0xff]
        %v329 = vld [vmem:[%s226 + $0x1e8] sm:$0xff]
        %v330 = vld [vmem:[%s226 + $0x1f0] sm:$0xff]
        %v331 = vld [vmem:[%s226 + $0x1f8] sm:$0xff]
        %v332 = vpack.c.bf16 %v272, %v268
        %v333 = vpack.c.bf16 %v273, %v269
        %v334 = vpack.c.bf16 %v274, %v270
        %v335 = vpack.c.bf16 %v275, %v271
        %v336 = vpack.c.bf16 %v280, %v276
        %v337 = vpack.c.bf16 %v281, %v277
        %v338 = vpack.c.bf16 %v282, %v278
        %v339 = vpack.c.bf16 %v283, %v279
        %v340 = vpack.c.bf16 %v288, %v284
        %v341 = vpack.c.bf16 %v289, %v285
        %v342 = vpack.c.bf16 %v290, %v286
        %v343 = vpack.c.bf16 %v291, %v287
        %v344 = vpack.c.bf16 %v296, %v292
        %v345 = vpack.c.bf16 %v297, %v293
        %v346 = vpack.c.bf16 %v298, %v294
        %v347 = vpack.c.bf16 %v299, %v295
        %v348 = vpack.c.bf16 %v304, %v300
        %v349 = vpack.c.bf16 %v305, %v301
        %v350 = vpack.c.bf16 %v306, %v302
        %v351 = vpack.c.bf16 %v307, %v303
        %v352 = vpack.c.bf16 %v312, %v308
        %v353 = vpack.c.bf16 %v313, %v309
        %v354 = vpack.c.bf16 %v314, %v310
        %v355 = vpack.c.bf16 %v315, %v311
        %v356 = vpack.c.bf16 %v320, %v316
        %v357 = vpack.c.bf16 %v321, %v317
        %v358 = vpack.c.bf16 %v322, %v318
        %v359 = vpack.c.bf16 %v323, %v319
        %v360 = vpack.c.bf16 %v328, %v324
        %v361 = vpack.c.bf16 %v329, %v325
        %v362 = vpack.c.bf16 %v330, %v326
        %v363 = vpack.c.bf16 %v331, %v327
        %v364 = vld [vmem:[#allocation5] sm:$0xff]
        %v365 = vld [vmem:[#allocation5 + $0x8] sm:$0xff]
        %v366 = vld [vmem:[#allocation5 + $0x10] sm:$0xff]
        %v367 = vld [vmem:[#allocation5 + $0x18] sm:$0xff]
        %v368 = vld [vmem:[#allocation5 + $0x20] sm:$0xff]
        %v369 = vld [vmem:[#allocation5 + $0x28] sm:$0xff]
        %v370 = vld [vmem:[#allocation5 + $0x30] sm:$0xff]
        %v371 = vld [vmem:[#allocation5 + $0x38] sm:$0xff]
        %v372 = vld [vmem:[#allocation5 + $0x40] sm:$0xff]
        %v373 = vld [vmem:[#allocation5 + $0x48] sm:$0xff]
        %v374 = vld [vmem:[#allocation5 + $0x50] sm:$0xff]
        %v375 = vld [vmem:[#allocation5 + $0x58] sm:$0xff]
        %v376 = vld [vmem:[#allocation5 + $0x60] sm:$0xff]
        %v377 = vld [vmem:[#allocation5 + $0x68] sm:$0xff]
        %v378 = vld [vmem:[#allocation5 + $0x70] sm:$0xff]
        %v379 = vld [vmem:[#allocation5 + $0x78] sm:$0xff]
        %v380 = vld [vmem:[#allocation5 + $0x80] sm:$0xff]
        %v381 = vld [vmem:[#allocation5 + $0x88] sm:$0xff]
        %v382 = vld [vmem:[#allocation5 + $0x90] sm:$0xff]
        %v383 = vld [vmem:[#allocation5 + $0x98] sm:$0xff]
        %v384 = vld [vmem:[#allocation5 + $0xa0] sm:$0xff]
        %v385 = vld [vmem:[#allocation5 + $0xa8] sm:$0xff]
        %v386 = vld [vmem:[#allocation5 + $0xb0] sm:$0xff]
        %v387 = vld [vmem:[#allocation5 + $0xb8] sm:$0xff]
        %v388 = vld [vmem:[#allocation5 + $0xc0] sm:$0xff]
        %v389 = vld [vmem:[#allocation5 + $0xc8] sm:$0xff]
        %v390 = vld [vmem:[#allocation5 + $0xd0] sm:$0xff]
        %v391 = vld [vmem:[#allocation5 + $0xd8] sm:$0xff]
        %v392 = vld [vmem:[#allocation5 + $0xe0] sm:$0xff]
        %v393 = vld [vmem:[#allocation5 + $0xe8] sm:$0xff]
        %v394 = vld [vmem:[#allocation5 + $0xf0] sm:$0xff]
        %v395 = vld [vmem:[#allocation5 + $0xf8] sm:$0xff]
        %v396 = vld [vmem:[#allocation5 + $0x100] sm:$0xff]
        %v397 = vld [vmem:[#allocation5 + $0x108] sm:$0xff]
        %v398 = vld [vmem:[#allocation5 + $0x110] sm:$0xff]
        %v399 = vld [vmem:[#allocation5 + $0x118] sm:$0xff]
        %v400 = vld [vmem:[#allocation5 + $0x120] sm:$0xff]
        %v401 = vld [vmem:[#allocation5 + $0x128] sm:$0xff]
        %v402 = vld [vmem:[#allocation5 + $0x130] sm:$0xff]
        %v403 = vld [vmem:[#allocation5 + $0x138] sm:$0xff]
        %v404 = vld [vmem:[#allocation5 + $0x140] sm:$0xff]
        %v405 = vld [vmem:[#allocation5 + $0x148] sm:$0xff]
        %v406 = vld [vmem:[#allocation5 + $0x150] sm:$0xff]
        %v407 = vld [vmem:[#allocation5 + $0x158] sm:$0xff]
        %v408 = vld [vmem:[#allocation5 + $0x160] sm:$0xff]
        %v409 = vld [vmem:[#allocation5 + $0x168] sm:$0xff]
        %v410 = vld [vmem:[#allocation5 + $0x170] sm:$0xff]
        %v411 = vld [vmem:[#allocation5 + $0x178] sm:$0xff]
        %v412 = vld [vmem:[#allocation5 + $0x180] sm:$0xff]
        %v413 = vld [vmem:[#allocation5 + $0x188] sm:$0xff]
        %v414 = vld [vmem:[#allocation5 + $0x190] sm:$0xff]
        %v415 = vld [vmem:[#allocation5 + $0x198] sm:$0xff]
        %v416 = vld [vmem:[#allocation5 + $0x1a0] sm:$0xff]
        %v417 = vld [vmem:[#allocation5 + $0x1a8] sm:$0xff]
        %v418 = vld [vmem:[#allocation5 + $0x1b0] sm:$0xff]
        %v419 = vld [vmem:[#allocation5 + $0x1b8] sm:$0xff]
        %v420 = vld [vmem:[#allocation5 + $0x1c0] sm:$0xff]
        %v421 = vld [vmem:[#allocation5 + $0x1c8] sm:$0xff]
        %v422 = vld [vmem:[#allocation5 + $0x1d0] sm:$0xff]
        %v423 = vld [vmem:[#allocation5 + $0x1d8] sm:$0xff]
        %v424 = vld [vmem:[#allocation5 + $0x1e0] sm:$0xff]
        %v425 = vld [vmem:[#allocation5 + $0x1e8] sm:$0xff]
        %v426 = vld [vmem:[#allocation5 + $0x1f0] sm:$0xff]
        %v427 = vld [vmem:[#allocation5 + $0x1f8] sm:$0xff]
        %v428 = vld [vmem:[#allocation5 + $0x200] sm:$0xff]
        %v429 = vld [vmem:[#allocation5 + $0x208] sm:$0xff]
        %v430 = vld [vmem:[#allocation5 + $0x210] sm:$0xff]
        %v431 = vld [vmem:[#allocation5 + $0x218] sm:$0xff]
        %v432 = vld [vmem:[#allocation5 + $0x220] sm:$0xff]
        %v433 = vld [vmem:[#allocation5 + $0x228] sm:$0xff]
        %v434 = vld [vmem:[#allocation5 + $0x230] sm:$0xff]
        %v435 = vld [vmem:[#allocation5 + $0x238] sm:$0xff]
        %v436 = vld [vmem:[#allocation5 + $0x240] sm:$0xff]
        %v437 = vld [vmem:[#allocation5 + $0x248] sm:$0xff]
        %v438 = vld [vmem:[#allocation5 + $0x250] sm:$0xff]
        %v439 = vld [vmem:[#allocation5 + $0x258] sm:$0xff]
        %v440 = vld [vmem:[#allocation5 + $0x260] sm:$0xff]
        %v441 = vld [vmem:[#allocation5 + $0x268] sm:$0xff]
        %v442 = vld [vmem:[#allocation5 + $0x270] sm:$0xff]
        %v443 = vld [vmem:[#allocation5 + $0x278] sm:$0xff]
        %v444 = vld [vmem:[#allocation5 + $0x280] sm:$0xff]
        %v445 = vld [vmem:[#allocation5 + $0x288] sm:$0xff]
        %v446 = vld [vmem:[#allocation5 + $0x290] sm:$0xff]
        %v447 = vld [vmem:[#allocation5 + $0x298] sm:$0xff]
        %v448 = vld [vmem:[#allocation5 + $0x2a0] sm:$0xff]
        %v449 = vld [vmem:[#allocation5 + $0x2a8] sm:$0xff]
        %v450 = vld [vmem:[#allocation5 + $0x2b0] sm:$0xff]
        %v451 = vld [vmem:[#allocation5 + $0x2b8] sm:$0xff]
        %v452 = vld [vmem:[#allocation5 + $0x2c0] sm:$0xff]
        %v453 = vld [vmem:[#allocation5 + $0x2c8] sm:$0xff]
        %v454 = vld [vmem:[#allocation5 + $0x2d0] sm:$0xff]
        %v455 = vld [vmem:[#allocation5 + $0x2d8] sm:$0xff]
        %v456 = vld [vmem:[#allocation5 + $0x2e0] sm:$0xff]
        %v457 = vld [vmem:[#allocation5 + $0x2e8] sm:$0xff]
        %v458 = vld [vmem:[#allocation5 + $0x2f0] sm:$0xff]
        %v459 = vld [vmem:[#allocation5 + $0x2f8] sm:$0xff]
        %v460 = vld [vmem:[#allocation5 + $0x300] sm:$0xff]
        %v461 = vld [vmem:[#allocation5 + $0x308] sm:$0xff]
        %v462 = vld [vmem:[#allocation5 + $0x310] sm:$0xff]
        %v463 = vld [vmem:[#allocation5 + $0x318] sm:$0xff]
        %v464 = vld [vmem:[#allocation5 + $0x320] sm:$0xff]
        %v465 = vld [vmem:[#allocation5 + $0x328] sm:$0xff]
        %v466 = vld [vmem:[#allocation5 + $0x330] sm:$0xff]
        %v467 = vld [vmem:[#allocation5 + $0x338] sm:$0xff]
        %v468 = vld [vmem:[#allocation5 + $0x340] sm:$0xff]
        %v469 = vld [vmem:[#allocation5 + $0x348] sm:$0xff]
        %v470 = vld [vmem:[#allocation5 + $0x350] sm:$0xff]
        %v471 = vld [vmem:[#allocation5 + $0x358] sm:$0xff]
        %v472 = vld [vmem:[#allocation5 + $0x360] sm:$0xff]
        %v473 = vld [vmem:[#allocation5 + $0x368] sm:$0xff]
        %v474 = vld [vmem:[#allocation5 + $0x370] sm:$0xff]
        %v475 = vld [vmem:[#allocation5 + $0x378] sm:$0xff]
        %v476 = vld [vmem:[#allocation5 + $0x380] sm:$0xff]
        %v477 = vld [vmem:[#allocation5 + $0x388] sm:$0xff]
        %v478 = vld [vmem:[#allocation5 + $0x390] sm:$0xff]
        %v479 = vld [vmem:[#allocation5 + $0x398] sm:$0xff]
        %v480 = vld [vmem:[#allocation5 + $0x3a0] sm:$0xff]
        %v481 = vld [vmem:[#allocation5 + $0x3a8] sm:$0xff]
        %v482 = vld [vmem:[#allocation5 + $0x3b0] sm:$0xff]
        %v483 = vld [vmem:[#allocation5 + $0x3b8] sm:$0xff]
        %v484 = vld [vmem:[#allocation5 + $0x3c0] sm:$0xff]
        %v485 = vld [vmem:[#allocation5 + $0x3c8] sm:$0xff]
        %v486 = vld [vmem:[#allocation5 + $0x3d0] sm:$0xff]
        %v487 = vld [vmem:[#allocation5 + $0x3d8] sm:$0xff]
        %v488 = vld [vmem:[#allocation5 + $0x3e0] sm:$0xff]
        %v489 = vld [vmem:[#allocation5 + $0x3e8] sm:$0xff]
        %v490 = vld [vmem:[#allocation5 + $0x3f0] sm:$0xff]
        %v491 = vld [vmem:[#allocation5 + $0x3f8] sm:$0xff]
        %v492 = vld [vmem:[#allocation5 + $0x400] sm:$0xff]
        %v493 = vld [vmem:[#allocation5 + $0x408] sm:$0xff]
        %v494 = vld [vmem:[#allocation5 + $0x410] sm:$0xff]
        %v495 = vld [vmem:[#allocation5 + $0x418] sm:$0xff]
        %v496 = vld [vmem:[#allocation5 + $0x420] sm:$0xff]
        %v497 = vld [vmem:[#allocation5 + $0x428] sm:$0xff]
        %v498 = vld [vmem:[#allocation5 + $0x430] sm:$0xff]
        %v499 = vld [vmem:[#allocation5 + $0x438] sm:$0xff]
        %v500 = vld [vmem:[#allocation5 + $0x440] sm:$0xff]
        %v501 = vld [vmem:[#allocation5 + $0x448] sm:$0xff]
        %v502 = vld [vmem:[#allocation5 + $0x450] sm:$0xff]
        %v503 = vld [vmem:[#allocation5 + $0x458] sm:$0xff]
        %v504 = vld [vmem:[#allocation5 + $0x460] sm:$0xff]
        %v505 = vld [vmem:[#allocation5 + $0x468] sm:$0xff]
        %v506 = vld [vmem:[#allocation5 + $0x470] sm:$0xff]
        %v507 = vld [vmem:[#allocation5 + $0x478] sm:$0xff]
        %v508 = vld [vmem:[#allocation5 + $0x480] sm:$0xff]
        %v509 = vld [vmem:[#allocation5 + $0x488] sm:$0xff]
        %v510 = vld [vmem:[#allocation5 + $0x490] sm:$0xff]
        %v511 = vld [vmem:[#allocation5 + $0x498] sm:$0xff]
        %v512 = vld [vmem:[#allocation5 + $0x4a0] sm:$0xff]
        %v513 = vld [vmem:[#allocation5 + $0x4a8] sm:$0xff]
        %v514 = vld [vmem:[#allocation5 + $0x4b0] sm:$0xff]
        %v515 = vld [vmem:[#allocation5 + $0x4b8] sm:$0xff]
        %v516 = vld [vmem:[#allocation5 + $0x4c0] sm:$0xff]
        %v517 = vld [vmem:[#allocation5 + $0x4c8] sm:$0xff]
        %v518 = vld [vmem:[#allocation5 + $0x4d0] sm:$0xff]
        %v519 = vld [vmem:[#allocation5 + $0x4d8] sm:$0xff]
        %v520 = vld [vmem:[#allocation5 + $0x4e0] sm:$0xff]
        %v521 = vld [vmem:[#allocation5 + $0x4e8] sm:$0xff]
        %v522 = vld [vmem:[#allocation5 + $0x4f0] sm:$0xff]
        %v523 = vld [vmem:[#allocation5 + $0x4f8] sm:$0xff]
        %v524 = vld [vmem:[#allocation5 + $0x500] sm:$0xff]
        %v525 = vld [vmem:[#allocation5 + $0x508] sm:$0xff]
        %v526 = vld [vmem:[#allocation5 + $0x510] sm:$0xff]
        %v527 = vld [vmem:[#allocation5 + $0x518] sm:$0xff]
        %v528 = vld [vmem:[#allocation5 + $0x520] sm:$0xff]
        %v529 = vld [vmem:[#allocation5 + $0x528] sm:$0xff]
        %v530 = vld [vmem:[#allocation5 + $0x530] sm:$0xff]
        %v531 = vld [vmem:[#allocation5 + $0x538] sm:$0xff]
        %v532 = vld [vmem:[#allocation5 + $0x540] sm:$0xff]
        %v533 = vld [vmem:[#allocation5 + $0x548] sm:$0xff]
        %v534 = vld [vmem:[#allocation5 + $0x550] sm:$0xff]
        %v535 = vld [vmem:[#allocation5 + $0x558] sm:$0xff]
        %v536 = vld [vmem:[#allocation5 + $0x560] sm:$0xff]
        %v537 = vld [vmem:[#allocation5 + $0x568] sm:$0xff]
        %v538 = vld [vmem:[#allocation5 + $0x570] sm:$0xff]
        %v539 = vld [vmem:[#allocation5 + $0x578] sm:$0xff]
        %v540 = vld [vmem:[#allocation5 + $0x580] sm:$0xff]
        %v541 = vld [vmem:[#allocation5 + $0x588] sm:$0xff]
        %v542 = vld [vmem:[#allocation5 + $0x590] sm:$0xff]
        %v543 = vld [vmem:[#allocation5 + $0x598] sm:$0xff]
        %v544 = vld [vmem:[#allocation5 + $0x5a0] sm:$0xff]
        %v545 = vld [vmem:[#allocation5 + $0x5a8] sm:$0xff]
        %v546 = vld [vmem:[#allocation5 + $0x5b0] sm:$0xff]
        %v547 = vld [vmem:[#allocation5 + $0x5b8] sm:$0xff]
        %v548 = vld [vmem:[#allocation5 + $0x5c0] sm:$0xff]
        %v549 = vld [vmem:[#allocation5 + $0x5c8] sm:$0xff]
        %v550 = vld [vmem:[#allocation5 + $0x5d0] sm:$0xff]
        %v551 = vld [vmem:[#allocation5 + $0x5d8] sm:$0xff]
        %v552 = vld [vmem:[#allocation5 + $0x5e0] sm:$0xff]
        %v553 = vld [vmem:[#allocation5 + $0x5e8] sm:$0xff]
        %v554 = vld [vmem:[#allocation5 + $0x5f0] sm:$0xff]
        %v555 = vld [vmem:[#allocation5 + $0x5f8] sm:$0xff]
        %v556 = vld [vmem:[#allocation5 + $0x600] sm:$0xff]
        %v557 = vld [vmem:[#allocation5 + $0x608] sm:$0xff]
        %v558 = vld [vmem:[#allocation5 + $0x610] sm:$0xff]
        %v559 = vld [vmem:[#allocation5 + $0x618] sm:$0xff]
        %v560 = vld [vmem:[#allocation5 + $0x620] sm:$0xff]
        %v561 = vld [vmem:[#allocation5 + $0x628] sm:$0xff]
        %v562 = vld [vmem:[#allocation5 + $0x630] sm:$0xff]
        %v563 = vld [vmem:[#allocation5 + $0x638] sm:$0xff]
        %v564 = vld [vmem:[#allocation5 + $0x640] sm:$0xff]
        %v565 = vld [vmem:[#allocation5 + $0x648] sm:$0xff]
        %v566 = vld [vmem:[#allocation5 + $0x650] sm:$0xff]
        %v567 = vld [vmem:[#allocation5 + $0x658] sm:$0xff]
        %v568 = vld [vmem:[#allocation5 + $0x660] sm:$0xff]
        %v569 = vld [vmem:[#allocation5 + $0x668] sm:$0xff]
        %v570 = vld [vmem:[#allocation5 + $0x670] sm:$0xff]
        %v571 = vld [vmem:[#allocation5 + $0x678] sm:$0xff]
        %v572 = vld [vmem:[#allocation5 + $0x680] sm:$0xff]
        %v573 = vld [vmem:[#allocation5 + $0x688] sm:$0xff]
        %v574 = vld [vmem:[#allocation5 + $0x690] sm:$0xff]
        %v575 = vld [vmem:[#allocation5 + $0x698] sm:$0xff]
        %v576 = vld [vmem:[#allocation5 + $0x6a0] sm:$0xff]
        %v577 = vld [vmem:[#allocation5 + $0x6a8] sm:$0xff]
        %v578 = vld [vmem:[#allocation5 + $0x6b0] sm:$0xff]
        %v579 = vld [vmem:[#allocation5 + $0x6b8] sm:$0xff]
        %v580 = vld [vmem:[#allocation5 + $0x6c0] sm:$0xff]
        %v581 = vld [vmem:[#allocation5 + $0x6c8] sm:$0xff]
        %v582 = vld [vmem:[#allocation5 + $0x6d0] sm:$0xff]
        %v583 = vld [vmem:[#allocation5 + $0x6d8] sm:$0xff]
        %v584 = vld [vmem:[#allocation5 + $0x6e0] sm:$0xff]
        %v585 = vld [vmem:[#allocation5 + $0x6e8] sm:$0xff]
        %v586 = vld [vmem:[#allocation5 + $0x6f0] sm:$0xff]
        %v587 = vld [vmem:[#allocation5 + $0x6f8] sm:$0xff]
        %v588 = vld [vmem:[#allocation5 + $0x700] sm:$0xff]
        %v589 = vld [vmem:[#allocation5 + $0x708] sm:$0xff]
        %v590 = vld [vmem:[#allocation5 + $0x710] sm:$0xff]
        %v591 = vld [vmem:[#allocation5 + $0x718] sm:$0xff]
        %v592 = vld [vmem:[#allocation5 + $0x720] sm:$0xff]
        %v593 = vld [vmem:[#allocation5 + $0x728] sm:$0xff]
        %v594 = vld [vmem:[#allocation5 + $0x730] sm:$0xff]
        %v595 = vld [vmem:[#allocation5 + $0x738] sm:$0xff]
        %v596 = vld [vmem:[#allocation5 + $0x740] sm:$0xff]
        %v597 = vld [vmem:[#allocation5 + $0x748] sm:$0xff]
        %v598 = vld [vmem:[#allocation5 + $0x750] sm:$0xff]
        %v599 = vld [vmem:[#allocation5 + $0x758] sm:$0xff]
        %v600 = vld [vmem:[#allocation5 + $0x760] sm:$0xff]
        %v601 = vld [vmem:[#allocation5 + $0x768] sm:$0xff]
        %v602 = vld [vmem:[#allocation5 + $0x770] sm:$0xff]
        %v603 = vld [vmem:[#allocation5 + $0x778] sm:$0xff]
        %v604 = vld [vmem:[#allocation5 + $0x780] sm:$0xff]
        %v605 = vld [vmem:[#allocation5 + $0x788] sm:$0xff]
        %v606 = vld [vmem:[#allocation5 + $0x790] sm:$0xff]
        %v607 = vld [vmem:[#allocation5 + $0x798] sm:$0xff]
        %v608 = vld [vmem:[#allocation5 + $0x7a0] sm:$0xff]
        %v609 = vld [vmem:[#allocation5 + $0x7a8] sm:$0xff]
        %v610 = vld [vmem:[#allocation5 + $0x7b0] sm:$0xff]
        %v611 = vld [vmem:[#allocation5 + $0x7b8] sm:$0xff]
        %v612 = vld [vmem:[#allocation5 + $0x7c0] sm:$0xff]
        %v613 = vld [vmem:[#allocation5 + $0x7c8] sm:$0xff]
        %v614 = vld [vmem:[#allocation5 + $0x7d0] sm:$0xff]
        %v615 = vld [vmem:[#allocation5 + $0x7d8] sm:$0xff]
        %v616 = vld [vmem:[#allocation5 + $0x7e0] sm:$0xff]
        %v617 = vld [vmem:[#allocation5 + $0x7e8] sm:$0xff]
        %v618 = vld [vmem:[#allocation5 + $0x7f0] sm:$0xff]
        %v619 = vld [vmem:[#allocation5 + $0x7f8] sm:$0xff]
        %v620 = vpack.c.bf16 %v368, %v364
        %v621 = vpack.c.bf16 %v369, %v365
        %v622 = vpack.c.bf16 %v370, %v366
        %v623 = vpack.c.bf16 %v371, %v367
        %v624 = vpack.c.bf16 %v376, %v372
        %v625 = vpack.c.bf16 %v377, %v373
        %v626 = vpack.c.bf16 %v378, %v374
        %v627 = vpack.c.bf16 %v379, %v375
        %v628 = vpack.c.bf16 %v384, %v380
        %v629 = vpack.c.bf16 %v385, %v381
        %v630 = vpack.c.bf16 %v386, %v382
        %v631 = vpack.c.bf16 %v387, %v383
        %v632 = vpack.c.bf16 %v392, %v388
        %v633 = vpack.c.bf16 %v393, %v389
        %v634 = vpack.c.bf16 %v394, %v390
        %v635 = vpack.c.bf16 %v395, %v391
        %v636 = vpack.c.bf16 %v400, %v396
        %v637 = vpack.c.bf16 %v401, %v397
        %v638 = vpack.c.bf16 %v402, %v398
        %v639 = vpack.c.bf16 %v403, %v399
        %v640 = vpack.c.bf16 %v408, %v404
        %v641 = vpack.c.bf16 %v409, %v405
        %v642 = vpack.c.bf16 %v410, %v406
        %v643 = vpack.c.bf16 %v411, %v407
        %v644 = vpack.c.bf16 %v416, %v412
        %v645 = vpack.c.bf16 %v417, %v413
        %v646 = vpack.c.bf16 %v418, %v414
        %v647 = vpack.c.bf16 %v419, %v415
        %v648 = vpack.c.bf16 %v424, %v420
        %v649 = vpack.c.bf16 %v425, %v421
        %v650 = vpack.c.bf16 %v426, %v422
        %v651 = vpack.c.bf16 %v427, %v423
        %v652 = vpack.c.bf16 %v432, %v428
        %v653 = vpack.c.bf16 %v433, %v429
        %v654 = vpack.c.bf16 %v434, %v430
        %v655 = vpack.c.bf16 %v435, %v431
        %v656 = vpack.c.bf16 %v440, %v436
        %v657 = vpack.c.bf16 %v441, %v437
        %v658 = vpack.c.bf16 %v442, %v438
        %v659 = vpack.c.bf16 %v443, %v439
        %v660 = vpack.c.bf16 %v448, %v444
        %v661 = vpack.c.bf16 %v449, %v445
        %v662 = vpack.c.bf16 %v450, %v446
        %v663 = vpack.c.bf16 %v451, %v447
        %v664 = vpack.c.bf16 %v456, %v452
        %v665 = vpack.c.bf16 %v457, %v453
        %v666 = vpack.c.bf16 %v458, %v454
        %v667 = vpack.c.bf16 %v459, %v455
        %v668 = vpack.c.bf16 %v464, %v460
        %v669 = vpack.c.bf16 %v465, %v461
        %v670 = vpack.c.bf16 %v466, %v462
        %v671 = vpack.c.bf16 %v467, %v463
        %v672 = vpack.c.bf16 %v472, %v468
        %v673 = vpack.c.bf16 %v473, %v469
        %v674 = vpack.c.bf16 %v474, %v470
        %v675 = vpack.c.bf16 %v475, %v471
        %v676 = vpack.c.bf16 %v480, %v476
        %v677 = vpack.c.bf16 %v481, %v477
        %v678 = vpack.c.bf16 %v482, %v478
        %v679 = vpack.c.bf16 %v483, %v479
        %v680 = vpack.c.bf16 %v488, %v484
        %v681 = vpack.c.bf16 %v489, %v485
        %v682 = vpack.c.bf16 %v490, %v486
        %v683 = vpack.c.bf16 %v491, %v487
        %v684 = vpack.c.bf16 %v496, %v492
        %v685 = vpack.c.bf16 %v497, %v493
        %v686 = vpack.c.bf16 %v498, %v494
        %v687 = vpack.c.bf16 %v499, %v495
        %v688 = vpack.c.bf16 %v504, %v500
        %v689 = vpack.c.bf16 %v505, %v501
        %v690 = vpack.c.bf16 %v506, %v502
        %v691 = vpack.c.bf16 %v507, %v503
        %v692 = vpack.c.bf16 %v512, %v508
        %v693 = vpack.c.bf16 %v513, %v509
        %v694 = vpack.c.bf16 %v514, %v510
        %v695 = vpack.c.bf16 %v515, %v511
        %v696 = vpack.c.bf16 %v520, %v516
        %v697 = vpack.c.bf16 %v521, %v517
        %v698 = vpack.c.bf16 %v522, %v518
        %v699 = vpack.c.bf16 %v523, %v519
        %v700 = vpack.c.bf16 %v528, %v524
        %v701 = vpack.c.bf16 %v529, %v525
        %v702 = vpack.c.bf16 %v530, %v526
        %v703 = vpack.c.bf16 %v531, %v527
        %v704 = vpack.c.bf16 %v536, %v532
        %v705 = vpack.c.bf16 %v537, %v533
        %v706 = vpack.c.bf16 %v538, %v534
        %v707 = vpack.c.bf16 %v539, %v535
        %v708 = vpack.c.bf16 %v544, %v540
        %v709 = vpack.c.bf16 %v545, %v541
        %v710 = vpack.c.bf16 %v546, %v542
        %v711 = vpack.c.bf16 %v547, %v543
        %v712 = vpack.c.bf16 %v552, %v548
        %v713 = vpack.c.bf16 %v553, %v549
        %v714 = vpack.c.bf16 %v554, %v550
        %v715 = vpack.c.bf16 %v555, %v551
        %v716 = vpack.c.bf16 %v560, %v556
        %v717 = vpack.c.bf16 %v561, %v557
        %v718 = vpack.c.bf16 %v562, %v558
        %v719 = vpack.c.bf16 %v563, %v559
        %v720 = vpack.c.bf16 %v568, %v564
        %v721 = vpack.c.bf16 %v569, %v565
        %v722 = vpack.c.bf16 %v570, %v566
        %v723 = vpack.c.bf16 %v571, %v567
        %v724 = vpack.c.bf16 %v576, %v572
        %v725 = vpack.c.bf16 %v577, %v573
        %v726 = vpack.c.bf16 %v578, %v574
        %v727 = vpack.c.bf16 %v579, %v575
        %v728 = vpack.c.bf16 %v584, %v580
        %v729 = vpack.c.bf16 %v585, %v581
        %v730 = vpack.c.bf16 %v586, %v582
        %v731 = vpack.c.bf16 %v587, %v583
        %v732 = vpack.c.bf16 %v592, %v588
        %v733 = vpack.c.bf16 %v593, %v589
        %v734 = vpack.c.bf16 %v594, %v590
        %v735 = vpack.c.bf16 %v595, %v591
        %v736 = vpack.c.bf16 %v600, %v596
        %v737 = vpack.c.bf16 %v601, %v597
        %v738 = vpack.c.bf16 %v602, %v598
        %v739 = vpack.c.bf16 %v603, %v599
        %v740 = vpack.c.bf16 %v608, %v604
        %v741 = vpack.c.bf16 %v609, %v605
        %v742 = vpack.c.bf16 %v610, %v606
        %v743 = vpack.c.bf16 %v611, %v607
        %v744 = vpack.c.bf16 %v616, %v612
        %v745 = vpack.c.bf16 %v617, %v613
        %v746 = vpack.c.bf16 %v618, %v614
        %v747 = vpack.c.bf16 %v619, %v615
        %v748 = vld [vmem:[%s264] sm:$0xf]
        %v750 = vlaneseq
        %v751 = vshrl.u32 %v750, 7
        %v752 = vsub.s32 0, %v751
        %v753 = vrot.slane %v748, %v752
        %v754 = vlaneseq
        %v755 = vshrl.u32 %v754, 7
        %v756 = vsub.s32 1, %v755
        %v757 = vrot.slane %v748, %v756
        %v758 = vlaneseq
        %v759 = vshrl.u32 %v758, 7
        %v760 = vsub.s32 2, %v759
        %v761 = vrot.slane %v748, %v760
        %v762 = vlaneseq
        %v763 = vshrl.u32 %v762, 7
        %v764 = vsub.s32 3, %v763
        %v765 = vrot.slane %v748, %v764
        %770 = vmatprep.subr.bf16.mxu0 %v621
        %771 = vmatpush1.bf16.msra.mxu0 %v620
        %772 = vmatprep.subr.bf16.mxu0 %v625
        %773 = vmatpush1.bf16.msra.mxu0 %v624
        %774 = vmatprep.subr.bf16.mxu0 %v629
        %775 = vmatpush1.bf16.msra.mxu0 %v628
        %776 = vmatprep.subr.bf16.mxu0 %v633
        %777 = vmatpush1.bf16.msra.mxu0 %v632
        %778 = vmatprep.subr.bf16.mxu0 %v637
        %779 = vmatpush1.bf16.msra.mxu0 %v636
        %780 = vmatprep.subr.bf16.mxu0 %v641
        %781 = vmatpush1.bf16.msra.mxu0 %v640
        %782 = vmatprep.subr.bf16.mxu0 %v645
        %783 = vmatpush1.bf16.msra.mxu0 %v644
        %784 = vmatprep.subr.bf16.mxu0 %v649
        %785 = vmatpush1.bf16.msra.mxu0 %v648
        %786 = vmatprep.subr.bf16.mxu0 %v653
        %787 = vmatpush1.bf16.msra.mxu0 %v652
        %788 = vmatprep.subr.bf16.mxu0 %v657
        %789 = vmatpush1.bf16.msra.mxu0 %v656
        %790 = vmatprep.subr.bf16.mxu0 %v661
        %791 = vmatpush1.bf16.msra.mxu0 %v660
        %792 = vmatprep.subr.bf16.mxu0 %v665
        %793 = vmatpush1.bf16.msra.mxu0 %v664
        %794 = vmatprep.subr.bf16.mxu0 %v669
        %795 = vmatpush1.bf16.msra.mxu0 %v668
        %796 = vmatprep.subr.bf16.mxu0 %v673
        %797 = vmatpush1.bf16.msra.mxu0 %v672
        %798 = vmatprep.subr.bf16.mxu0 %v677
        %799 = vmatpush1.bf16.msra.mxu0 %v676
        %800 = vmatprep.subr.bf16.mxu0 %v681
        %801 = vmatpush1.bf16.msra.mxu0 %v680
        %802 = vmatprep.mubr.bf16.mxu0 %v333
        %803 = vmatmul.mubr.bf16.gmra.mrb[0].mxu0 %v332
        %v804 = vpop.f32.mrb[0].mxu0
        %v805 = vadd.f32 %v753, %v804
        %v806 = vpop.f32.mrb[0].mxu0
        %v807 = vadd.f32 %v757, %v806
        %v808 = vpop.f32.mrb[0].mxu0
        %v809 = vadd.f32 %v753, %v808
        %v810 = vpop.f32.mrb[0].mxu0
        %v811 = vadd.f32 %v757, %v810
        %812 = vmatprep.mubr.bf16.mxu0 %v337
        %813 = vmatmul.mubr.bf16.gmra.mrb[0].mxu0 %v336
        %v814 = vpop.f32.mrb[0].mxu0
        %v815 = vadd.f32 %v753, %v814
        %v816 = vpop.f32.mrb[0].mxu0
        %v817 = vadd.f32 %v757, %v816
        %v818 = vpop.f32.mrb[0].mxu0
        %v819 = vadd.f32 %v753, %v818
        %v820 = vpop.f32.mrb[0].mxu0
        %v821 = vadd.f32 %v757, %v820
        %822 = vmatprep.mubr.bf16.mxu0 %v341
        %823 = vmatmul.mubr.bf16.gmra.mrb[0].mxu0 %v340
        %v824 = vpop.f32.mrb[0].mxu0
        %v825 = vadd.f32 %v753, %v824
        %v826 = vpop.f32.mrb[0].mxu0
        %v827 = vadd.f32 %v757, %v826
        %v828 = vpop.f32.mrb[0].mxu0
        %v829 = vadd.f32 %v753, %v828
        %v830 = vpop.f32.mrb[0].mxu0
        %v831 = vadd.f32 %v757, %v830
        %832 = vmatprep.mubr.bf16.mxu0 %v345
        %833 = vmatmul.mubr.bf16.gmra.mrb[0].mxu0 %v344
        %v834 = vpop.f32.mrb[0].mxu0
        %v835 = vadd.f32 %v753, %v834
        %v836 = vpop.f32.mrb[0].mxu0
        %v837 = vadd.f32 %v757, %v836
        %v838 = vpop.f32.mrb[0].mxu0
        %v839 = vadd.f32 %v753, %v838
        %v840 = vpop.f32.mrb[0].mxu0
        %v841 = vadd.f32 %v757, %v840
        %842 = vmatprep.mubr.bf16.mxu0 %v349
        %843 = vmatmul.mubr.bf16.gmra.mrb[0].mxu0 %v348
        %v844 = vpop.f32.mrb[0].mxu0
        %v845 = vadd.f32 %v753, %v844
        %v846 = vpop.f32.mrb[0].mxu0
        %v847 = vadd.f32 %v757, %v846
        %v848 = vpop.f32.mrb[0].mxu0
        %v849 = vadd.f32 %v753, %v848
        %v850 = vpop.f32.mrb[0].mxu0
        %v851 = vadd.f32 %v757, %v850
        %852 = vmatprep.mubr.bf16.mxu0 %v353
        %853 = vmatmul.mubr.bf16.gmra.mrb[0].mxu0 %v352
        %v854 = vpop.f32.mrb[0].mxu0
        %v855 = vadd.f32 %v753, %v854
        %v856 = vpop.f32.mrb[0].mxu0
        %v857 = vadd.f32 %v757, %v856
        %v858 = vpop.f32.mrb[0].mxu0
        %v859 = vadd.f32 %v753, %v858
        %v860 = vpop.f32.mrb[0].mxu0
        %v861 = vadd.f32 %v757, %v860
        %862 = vmatprep.mubr.bf16.mxu0 %v357
        %863 = vmatmul.mubr.bf16.gmra.mrb[0].mxu0 %v356
        %v864 = vpop.f32.mrb[0].mxu0
        %v865 = vadd.f32 %v753, %v864
        %v866 = vpop.f32.mrb[0].mxu0
        %v867 = vadd.f32 %v757, %v866
        %v868 = vpop.f32.mrb[0].mxu0
        %v869 = vadd.f32 %v753, %v868
        %v870 = vpop.f32.mrb[0].mxu0
        %v871 = vadd.f32 %v757, %v870
        %872 = vmatprep.mubr.bf16.mxu0 %v361
        %873 = vmatmul.mubr.bf16.gmra.mrb[0].mxu0 %v360
        %v874 = vpop.f32.mrb[0].mxu0
        %v875 = vadd.f32 %v753, %v874
        %v876 = vpop.f32.mrb[0].mxu0
        %v877 = vadd.f32 %v757, %v876
        %v878 = vpop.f32.mrb[0].mxu0
        %v879 = vadd.f32 %v753, %v878
        %v880 = vpop.f32.mrb[0].mxu0
        %v881 = vadd.f32 %v757, %v880
        %882 = vdwg.mxu0
        %883 = vmatprep.subr.bf16.mxu0 %v685
        %884 = vmatpush1.bf16.msra.mxu0 %v684
        %885 = vmatprep.subr.bf16.mxu0 %v689
        %886 = vmatpush1.bf16.msra.mxu0 %v688
        %887 = vmatprep.subr.bf16.mxu0 %v693
        %888 = vmatpush1.bf16.msra.mxu0 %v692
        %889 = vmatprep.subr.bf16.mxu0 %v697
        %890 = vmatpush1.bf16.msra.mxu0 %v696
        %891 = vmatprep.subr.bf16.mxu0 %v701
        %892 = vmatpush1.bf16.msra.mxu0 %v700
        %893 = vmatprep.subr.bf16.mxu0 %v705
        %894 = vmatpush1.bf16.msra.mxu0 %v704
        %895 = vmatprep.subr.bf16.mxu0 %v709
        %896 = vmatpush1.bf16.msra.mxu0 %v708
        %897 = vmatprep.subr.bf16.mxu0 %v713
        %898 = vmatpush1.bf16.msra.mxu0 %v712
        %899 = vmatprep.subr.bf16.mxu0 %v717
        %900 = vmatpush1.bf16.msra.mxu0 %v716
        %901 = vmatprep.subr.bf16.mxu0 %v721
        %902 = vmatpush1.bf16.msra.mxu0 %v720
        %903 = vmatprep.subr.bf16.mxu0 %v725
        %904 = vmatpush1.bf16.msra.mxu0 %v724
        %905 = vmatprep.subr.bf16.mxu0 %v729
        %906 = vmatpush1.bf16.msra.mxu0 %v728
        %907 = vmatprep.subr.bf16.mxu0 %v733
        %908 = vmatpush1.bf16.msra.mxu0 %v732
        %909 = vmatprep.subr.bf16.mxu0 %v737
        %910 = vmatpush1.bf16.msra.mxu0 %v736
        %911 = vmatprep.subr.bf16.mxu0 %v741
        %912 = vmatpush1.bf16.msra.mxu0 %v740
        %913 = vmatprep.subr.bf16.mxu0 %v745
        %914 = vmatpush1.bf16.msra.mxu0 %v744
        %915 = vmatprep.mubr.bf16.mxu0 %v335
        %916 = vmatmul.mubr.bf16.gmra.mrb[0].mxu0 %v334
        %v917 = vpop.f32.mrb[0].mxu0
        %v918 = vadd.f32 %v805, %v917
        %v919 = vpop.f32.mrb[0].mxu0
        %v920 = vadd.f32 %v807, %v919
        %v921 = vpop.f32.mrb[0].mxu0
        %v922 = vadd.f32 %v809, %v921
        %v923 = vpop.f32.mrb[0].mxu0
        %v924 = vadd.f32 %v811, %v923
        %925 = vmatprep.mubr.bf16.mxu0 %v339
        %926 = vmatmul.mubr.bf16.gmra.mrb[0].mxu0 %v338
        %v927 = vpop.f32.mrb[0].mxu0
        %v928 = vadd.f32 %v815, %v927
        %v929 = vpop.f32.mrb[0].mxu0
        %v930 = vadd.f32 %v817, %v929
        %v931 = vpop.f32.mrb[0].mxu0
        %v932 = vadd.f32 %v819, %v931
        %v933 = vpop.f32.mrb[0].mxu0
        %v934 = vadd.f32 %v821, %v933
        %935 = vmatprep.mubr.bf16.mxu0 %v343
        %936 = vmatmul.mubr.bf16.gmra.mrb[0].mxu0 %v342
        %v937 = vpop.f32.mrb[0].mxu0
        %v938 = vadd.f32 %v825, %v937
        %v939 = vpop.f32.mrb[0].mxu0
        %v940 = vadd.f32 %v827, %v939
        %v941 = vpop.f32.mrb[0].mxu0
        %v942 = vadd.f32 %v829, %v941
        %v943 = vpop.f32.mrb[0].mxu0
        %v944 = vadd.f32 %v831, %v943
        %945 = vmatprep.mubr.bf16.mxu0 %v347
        %946 = vmatmul.mubr.bf16.gmra.mrb[0].mxu0 %v346
        %v947 = vpop.f32.mrb[0].mxu0
        %v948 = vadd.f32 %v835, %v947
        %v949 = vpop.f32.mrb[0].mxu0
        %v950 = vadd.f32 %v837, %v949
        %v951 = vpop.f32.mrb[0].mxu0
        %v952 = vadd.f32 %v839, %v951
        %v953 = vpop.f32.mrb[0].mxu0
        %v954 = vadd.f32 %v841, %v953
        %955 = vmatprep.mubr.bf16.mxu0 %v351
        %956 = vmatmul.mubr.bf16.gmra.mrb[0].mxu0 %v350
        %v957 = vpop.f32.mrb[0].mxu0
        %v958 = vadd.f32 %v845, %v957
        %v959 = vpop.f32.mrb[0].mxu0
        %v960 = vadd.f32 %v847, %v959
        %v961 = vpop.f32.mrb[0].mxu0
        %v962 = vadd.f32 %v849, %v961
        %v963 = vpop.f32.mrb[0].mxu0
        %v964 = vadd.f32 %v851, %v963
        %965 = vmatprep.mubr.bf16.mxu0 %v355
        %966 = vmatmul.mubr.bf16.gmra.mrb[0].mxu0 %v354
        %v967 = vpop.f32.mrb[0].mxu0
        %v968 = vadd.f32 %v855, %v967
        %v969 = vpop.f32.mrb[0].mxu0
        %v970 = vadd.f32 %v857, %v969
        %v971 = vpop.f32.mrb[0].mxu0
        %v972 = vadd.f32 %v859, %v971
        %v973 = vpop.f32.mrb[0].mxu0
        %v974 = vadd.f32 %v861, %v973
        %975 = vmatprep.mubr.bf16.mxu0 %v359
        %976 = vmatmul.mubr.bf16.gmra.mrb[0].mxu0 %v358
        %v977 = vpop.f32.mrb[0].mxu0
        %v978 = vadd.f32 %v865, %v977
        %v979 = vpop.f32.mrb[0].mxu0
        %v980 = vadd.f32 %v867, %v979
        %v981 = vpop.f32.mrb[0].mxu0
        %v982 = vadd.f32 %v869, %v981
        %v983 = vpop.f32.mrb[0].mxu0
        %v984 = vadd.f32 %v871, %v983
        %985 = vmatprep.mubr.bf16.mxu0 %v363
        %986 = vmatmul.mubr.bf16.gmra.mrb[0].mxu0 %v362
        %v987 = vpop.f32.mrb[0].mxu0
        %v988 = vadd.f32 %v875, %v987
        %v989 = vpop.f32.mrb[0].mxu0
        %v990 = vadd.f32 %v877, %v989
        %v991 = vpop.f32.mrb[0].mxu0
        %v992 = vadd.f32 %v879, %v991
        %v993 = vpop.f32.mrb[0].mxu0
        %v994 = vadd.f32 %v881, %v993
        %995 = vdwg.mxu0
        %996 = vmatprep.subr.bf16.mxu0 %v623
        %997 = vmatpush1.bf16.msra.mxu0 %v622
        %998 = vmatprep.subr.bf16.mxu0 %v627
        %999 = vmatpush1.bf16.msra.mxu0 %v626
        %1000 = vmatprep.subr.bf16.mxu0 %v631
        %1001 = vmatpush1.bf16.msra.mxu0 %v630
        %1002 = vmatprep.subr.bf16.mxu0 %v635
        %1003 = vmatpush1.bf16.msra.mxu0 %v634
        %1004 = vmatprep.subr.bf16.mxu0 %v639
        %1005 = vmatpush1.bf16.msra.mxu0 %v638
        %1006 = vmatprep.subr.bf16.mxu0 %v643
        %1007 = vmatpush1.bf16.msra.mxu0 %v642
        %1008 = vmatprep.subr.bf16.mxu0 %v647
        %1009 = vmatpush1.bf16.msra.mxu0 %v646
        %1010 = vmatprep.subr.bf16.mxu0 %v651
        %1011 = vmatpush1.bf16.msra.mxu0 %v650
        %1012 = vmatprep.subr.bf16.mxu0 %v655
        %1013 = vmatpush1.bf16.msra.mxu0 %v654
        %1014 = vmatprep.subr.bf16.mxu0 %v659
        %1015 = vmatpush1.bf16.msra.mxu0 %v658
        %1016 = vmatprep.subr.bf16.mxu0 %v663
        %1017 = vmatpush1.bf16.msra.mxu0 %v662
        %1018 = vmatprep.subr.bf16.mxu0 %v667
        %1019 = vmatpush1.bf16.msra.mxu0 %v666
        %1020 = vmatprep.subr.bf16.mxu0 %v671
        %1021 = vmatpush1.bf16.msra.mxu0 %v670
        %1022 = vmatprep.subr.bf16.mxu0 %v675
        %1023 = vmatpush1.bf16.msra.mxu0 %v674
        %1024 = vmatprep.subr.bf16.mxu0 %v679
        %1025 = vmatpush1.bf16.msra.mxu0 %v678
        %1026 = vmatprep.subr.bf16.mxu0 %v683
        %1027 = vmatpush1.bf16.msra.mxu0 %v682
        %1028 = vmatprep.mubr.bf16.mxu0 %v333
        %1029 = vmatmul.mubr.bf16.gmra.mrb[0].mxu0 %v332
        %v1030 = vpop.f32.mrb[0].mxu0
        %v1031 = vadd.f32 %v761, %v1030
        %v1032 = vpop.f32.mrb[0].mxu0
        %v1033 = vadd.f32 %v765, %v1032
        %v1034 = vpop.f32.mrb[0].mxu0
        %v1035 = vadd.f32 %v761, %v1034
        %v1036 = vpop.f32.mrb[0].mxu0
        %v1037 = vadd.f32 %v765, %v1036
        %1038 = vmatprep.mubr.bf16.mxu0 %v337
        %1039 = vmatmul.mubr.bf16.gmra.mrb[0].mxu0 %v336
        %v1040 = vpop.f32.mrb[0].mxu0
        %v1041 = vadd.f32 %v761, %v1040
        %v1042 = vpop.f32.mrb[0].mxu0
        %v1043 = vadd.f32 %v765, %v1042
        %v1044 = vpop.f32.mrb[0].mxu0
        %v1045 = vadd.f32 %v761, %v1044
        %v1046 = vpop.f32.mrb[0].mxu0
        %v1047 = vadd.f32 %v765, %v1046
        %1048 = vmatprep.mubr.bf16.mxu0 %v341
        %1049 = vmatmul.mubr.bf16.gmra.mrb[0].mxu0 %v340
        %v1050 = vpop.f32.mrb[0].mxu0
        %v1051 = vadd.f32 %v761, %v1050
        %v1052 = vpop.f32.mrb[0].mxu0
        %v1053 = vadd.f32 %v765, %v1052
        %v1054 = vpop.f32.mrb[0].mxu0
        %v1055 = vadd.f32 %v761, %v1054
        %v1056 = vpop.f32.mrb[0].mxu0
        %v1057 = vadd.f32 %v765, %v1056
        %1058 = vmatprep.mubr.bf16.mxu0 %v345
        %1059 = vmatmul.mubr.bf16.gmra.mrb[0].mxu0 %v344
        %v1060 = vpop.f32.mrb[0].mxu0
        %v1061 = vadd.f32 %v761, %v1060
        %v1062 = vpop.f32.mrb[0].mxu0
        %v1063 = vadd.f32 %v765, %v1062
        %v1064 = vpop.f32.mrb[0].mxu0
        %v1065 = vadd.f32 %v761, %v1064
        %v1066 = vpop.f32.mrb[0].mxu0
        %v1067 = vadd.f32 %v765, %v1066
        %1068 = vmatprep.mubr.bf16.mxu0 %v349
        %1069 = vmatmul.mubr.bf16.gmra.mrb[0].mxu0 %v348
        %v1070 = vpop.f32.mrb[0].mxu0
        %v1071 = vadd.f32 %v761, %v1070
        %v1072 = vpop.f32.mrb[0].mxu0
        %v1073 = vadd.f32 %v765, %v1072
        %v1074 = vpop.f32.mrb[0].mxu0
        %v1075 = vadd.f32 %v761, %v1074
        %v1076 = vpop.f32.mrb[0].mxu0
        %v1077 = vadd.f32 %v765, %v1076
        %1078 = vmatprep.mubr.bf16.mxu0 %v353
        %1079 = vmatmul.mubr.bf16.gmra.mrb[0].mxu0 %v352
        %v1080 = vpop.f32.mrb[0].mxu0
        %v1081 = vadd.f32 %v761, %v1080
        %v1082 = vpop.f32.mrb[0].mxu0
        %v1083 = vadd.f32 %v765, %v1082
        %v1084 = vpop.f32.mrb[0].mxu0
        %v1085 = vadd.f32 %v761, %v1084
        %v1086 = vpop.f32.mrb[0].mxu0
        %v1087 = vadd.f32 %v765, %v1086
        %1088 = vmatprep.mubr.bf16.mxu0 %v357
        %1089 = vmatmul.mubr.bf16.gmra.mrb[0].mxu0 %v356
        %v1090 = vpop.f32.mrb[0].mxu0
        %v1091 = vadd.f32 %v761, %v1090
        %v1092 = vpop.f32.mrb[0].mxu0
        %v1093 = vadd.f32 %v765, %v1092
        %v1094 = vpop.f32.mrb[0].mxu0
        %v1095 = vadd.f32 %v761, %v1094
        %v1096 = vpop.f32.mrb[0].mxu0
        %v1097 = vadd.f32 %v765, %v1096
        %1098 = vmatprep.mubr.bf16.mxu0 %v361
        %1099 = vmatmul.mubr.bf16.gmra.mrb[0].mxu0 %v360
        %v1100 = vpop.f32.mrb[0].mxu0
        %v1101 = vadd.f32 %v761, %v1100
        %v1102 = vpop.f32.mrb[0].mxu0
        %v1103 = vadd.f32 %v765, %v1102
        %v1104 = vpop.f32.mrb[0].mxu0
        %v1105 = vadd.f32 %v761, %v1104
        %v1106 = vpop.f32.mrb[0].mxu0
        %v1107 = vadd.f32 %v765, %v1106
        %1108 = vdwg.mxu0
        %1109 = vmatprep.subr.bf16.mxu0 %v687
        %1110 = vmatpush1.bf16.msra.mxu0 %v686
        %1111 = vmatprep.subr.bf16.mxu0 %v691
        %1112 = vmatpush1.bf16.msra.mxu0 %v690
        %1113 = vmatprep.subr.bf16.mxu0 %v695
        %1114 = vmatpush1.bf16.msra.mxu0 %v694
        %1115 = vmatprep.subr.bf16.mxu0 %v699
        %1116 = vmatpush1.bf16.msra.mxu0 %v698
        %1117 = vmatprep.subr.bf16.mxu0 %v703
        %1118 = vmatpush1.bf16.msra.mxu0 %v702
        %1119 = vmatprep.subr.bf16.mxu0 %v707
        %1120 = vmatpush1.bf16.msra.mxu0 %v706
        %1121 = vmatprep.subr.bf16.mxu0 %v711
        %1122 = vmatpush1.bf16.msra.mxu0 %v710
        %1123 = vmatprep.subr.bf16.mxu0 %v715
        %1124 = vmatpush1.bf16.msra.mxu0 %v714
        %1125 = vmatprep.subr.bf16.mxu0 %v719
        %1126 = vmatpush1.bf16.msra.mxu0 %v718
        %1127 = vmatprep.subr.bf16.mxu0 %v723
        %1128 = vmatpush1.bf16.msra.mxu0 %v722
        %1129 = vmatprep.subr.bf16.mxu0 %v727
        %1130 = vmatpush1.bf16.msra.mxu0 %v726
        %1131 = vmatprep.subr.bf16.mxu0 %v731
        %1132 = vmatpush1.bf16.msra.mxu0 %v730
        %1133 = vmatprep.subr.bf16.mxu0 %v735
        %1134 = vmatpush1.bf16.msra.mxu0 %v734
        %1135 = vmatprep.subr.bf16.mxu0 %v739
        %1136 = vmatpush1.bf16.msra.mxu0 %v738
        %1137 = vmatprep.subr.bf16.mxu0 %v743
        %1138 = vmatpush1.bf16.msra.mxu0 %v742
        %1139 = vmatprep.subr.bf16.mxu0 %v747
        %1140 = vmatpush1.bf16.msra.mxu0 %v746
        %1141 = vmatprep.mubr.bf16.mxu0 %v335
        %1142 = vmatmul.mubr.bf16.gmra.mrb[0].mxu0 %v334
        %v1143 = vpop.f32.mrb[0].mxu0
        %v1144 = vadd.f32 %v1031, %v1143
        %v1145 = vpop.f32.mrb[0].mxu0
        %v1146 = vadd.f32 %v1033, %v1145
        %v1147 = vpop.f32.mrb[0].mxu0
        %v1148 = vadd.f32 %v1035, %v1147
        %v1149 = vpop.f32.mrb[0].mxu0
        %v1150 = vadd.f32 %v1037, %v1149
        %1151 = vmatprep.mubr.bf16.mxu0 %v339
        %1152 = vmatmul.mubr.bf16.gmra.mrb[0].mxu0 %v338
        %v1153 = vpop.f32.mrb[0].mxu0
        %v1154 = vadd.f32 %v1041, %v1153
        %v1155 = vpop.f32.mrb[0].mxu0
        %v1156 = vadd.f32 %v1043, %v1155
        %v1157 = vpop.f32.mrb[0].mxu0
        %v1158 = vadd.f32 %v1045, %v1157
        %v1159 = vpop.f32.mrb[0].mxu0
        %v1160 = vadd.f32 %v1047, %v1159
        %1161 = vmatprep.mubr.bf16.mxu0 %v343
        %1162 = vmatmul.mubr.bf16.gmra.mrb[0].mxu0 %v342
        %v1163 = vpop.f32.mrb[0].mxu0
        %v1164 = vadd.f32 %v1051, %v1163
        %v1165 = vpop.f32.mrb[0].mxu0
        %v1166 = vadd.f32 %v1053, %v1165
        %v1167 = vpop.f32.mrb[0].mxu0
        %v1168 = vadd.f32 %v1055, %v1167
        %v1169 = vpop.f32.mrb[0].mxu0
        %v1170 = vadd.f32 %v1057, %v1169
        %1171 = vmatprep.mubr.bf16.mxu0 %v347
        %1172 = vmatmul.mubr.bf16.gmra.mrb[0].mxu0 %v346
        %v1173 = vpop.f32.mrb[0].mxu0
        %v1174 = vadd.f32 %v1061, %v1173
        %v1175 = vpop.f32.mrb[0].mxu0
        %v1176 = vadd.f32 %v1063, %v1175
        %v1177 = vpop.f32.mrb[0].mxu0
        %v1178 = vadd.f32 %v1065, %v1177
        %v1179 = vpop.f32.mrb[0].mxu0
        %v1180 = vadd.f32 %v1067, %v1179
        %1181 = vmatprep.mubr.bf16.mxu0 %v351
        %1182 = vmatmul.mubr.bf16.gmra.mrb[0].mxu0 %v350
        %v1183 = vpop.f32.mrb[0].mxu0
        %v1184 = vadd.f32 %v1071, %v1183
        %v1185 = vpop.f32.mrb[0].mxu0
        %v1186 = vadd.f32 %v1073, %v1185
        %v1187 = vpop.f32.mrb[0].mxu0
        %v1188 = vadd.f32 %v1075, %v1187
        %v1189 = vpop.f32.mrb[0].mxu0
        %v1190 = vadd.f32 %v1077, %v1189
        %1191 = vmatprep.mubr.bf16.mxu0 %v355
        %1192 = vmatmul.mubr.bf16.gmra.mrb[0].mxu0 %v354
        %v1193 = vpop.f32.mrb[0].mxu0
        %v1194 = vadd.f32 %v1081, %v1193
        %v1195 = vpop.f32.mrb[0].mxu0
        %v1196 = vadd.f32 %v1083, %v1195
        %v1197 = vpop.f32.mrb[0].mxu0
        %v1198 = vadd.f32 %v1085, %v1197
        %v1199 = vpop.f32.mrb[0].mxu0
        %v1200 = vadd.f32 %v1087, %v1199
        %1201 = vmatprep.mubr.bf16.mxu0 %v359
        %1202 = vmatmul.mubr.bf16.gmra.mrb[0].mxu0 %v358
        %v1203 = vpop.f32.mrb[0].mxu0
        %v1204 = vadd.f32 %v1091, %v1203
        %v1205 = vpop.f32.mrb[0].mxu0
        %v1206 = vadd.f32 %v1093, %v1205
        %v1207 = vpop.f32.mrb[0].mxu0
        %v1208 = vadd.f32 %v1095, %v1207
        %v1209 = vpop.f32.mrb[0].mxu0
        %v1210 = vadd.f32 %v1097, %v1209
        %1211 = vmatprep.mubr.bf16.mxu0 %v363
        %1212 = vmatmul.mubr.bf16.gmra.mrb[0].mxu0 %v362
        %v1213 = vpop.f32.mrb[0].mxu0
        %v1214 = vadd.f32 %v1101, %v1213
        %v1215 = vpop.f32.mrb[0].mxu0
        %v1216 = vadd.f32 %v1103, %v1215
        %v1217 = vpop.f32.mrb[0].mxu0
        %v1218 = vadd.f32 %v1105, %v1217
        %v1219 = vpop.f32.mrb[0].mxu0
        %v1220 = vadd.f32 %v1107, %v1219
        %1221 = vdwg.mxu0
        %1222 = vst [vmem:[%s256] sm:$0xff] %v918
        %1223 = vst [vmem:[%s256 + $0x8] sm:$0xff] %v920
        %1224 = vst [vmem:[%s256 + $0x10] sm:$0xff] %v1144
        %1225 = vst [vmem:[%s256 + $0x18] sm:$0xff] %v1146
        %1226 = vst [vmem:[%s256 + $0x20] sm:$0xff] %v922
        %1227 = vst [vmem:[%s256 + $0x28] sm:$0xff] %v924
        %1228 = vst [vmem:[%s256 + $0x30] sm:$0xff] %v1148
        %1229 = vst [vmem:[%s256 + $0x38] sm:$0xff] %v1150
        %1230 = vst [vmem:[%s256 + $0x40] sm:$0xff] %v928
        %1231 = vst [vmem:[%s256 + $0x48] sm:$0xff] %v930
        %1232 = vst [vmem:[%s256 + $0x50] sm:$0xff] %v1154
        %1233 = vst [vmem:[%s256 + $0x58] sm:$0xff] %v1156
        %1234 = vst [vmem:[%s256 + $0x60] sm:$0xff] %v932
        %1235 = vst [vmem:[%s256 + $0x68] sm:$0xff] %v934
        %1236 = vst [vmem:[%s256 + $0x70] sm:$0xff] %v1158
        %1237 = vst [vmem:[%s256 + $0x78] sm:$0xff] %v1160
        %1238 = vst [vmem:[%s256 + $0x80] sm:$0xff] %v938
        %1239 = vst [vmem:[%s256 + $0x88] sm:$0xff] %v940
        %1240 = vst [vmem:[%s256 + $0x90] sm:$0xff] %v1164
        %1241 = vst [vmem:[%s256 + $0x98] sm:$0xff] %v1166
        %1242 = vst [vmem:[%s256 + $0xa0] sm:$0xff] %v942
        %1243 = vst [vmem:[%s256 + $0xa8] sm:$0xff] %v944
        %1244 = vst [vmem:[%s256 + $0xb0] sm:$0xff] %v1168
        %1245 = vst [vmem:[%s256 + $0xb8] sm:$0xff] %v1170
        %1246 = vst [vmem:[%s256 + $0xc0] sm:$0xff] %v948
        %1247 = vst [vmem:[%s256 + $0xc8] sm:$0xff] %v950
        %1248 = vst [vmem:[%s256 + $0xd0] sm:$0xff] %v1174
        %1249 = vst [vmem:[%s256 + $0xd8] sm:$0xff] %v1176
        %1250 = vst [vmem:[%s256 + $0xe0] sm:$0xff] %v952
        %1251 = vst [vmem:[%s256 + $0xe8] sm:$0xff] %v954
        %1252 = vst [vmem:[%s256 + $0xf0] sm:$0xff] %v1178
        %1253 = vst [vmem:[%s256 + $0xf8] sm:$0xff] %v1180
        %1254 = vst [vmem:[%s256 + $0x100] sm:$0xff] %v958
        %1255 = vst [vmem:[%s256 + $0x108] sm:$0xff] %v960
        %1256 = vst [vmem:[%s256 + $0x110] sm:$0xff] %v1184
        %1257 = vst [vmem:[%s256 + $0x118] sm:$0xff] %v1186
        %1258 = vst [vmem:[%s256 + $0x120] sm:$0xff] %v962
        %1259 = vst [vmem:[%s256 + $0x128] sm:$0xff] %v964
        %1260 = vst [vmem:[%s256 + $0x130] sm:$0xff] %v1188
        %1261 = vst [vmem:[%s256 + $0x138] sm:$0xff] %v1190
        %1262 = vst [vmem:[%s256 + $0x140] sm:$0xff] %v968
        %1263 = vst [vmem:[%s256 + $0x148] sm:$0xff] %v970
        %1264 = vst [vmem:[%s256 + $0x150] sm:$0xff] %v1194
        %1265 = vst [vmem:[%s256 + $0x158] sm:$0xff] %v1196
        %1266 = vst [vmem:[%s256 + $0x160] sm:$0xff] %v972
        %1267 = vst [vmem:[%s256 + $0x168] sm:$0xff] %v974
        %1268 = vst [vmem:[%s256 + $0x170] sm:$0xff] %v1198
        %1269 = vst [vmem:[%s256 + $0x178] sm:$0xff] %v1200
        %1270 = vst [vmem:[%s256 + $0x180] sm:$0xff] %v978
        %1271 = vst [vmem:[%s256 + $0x188] sm:$0xff] %v980
        %1272 = vst [vmem:[%s256 + $0x190] sm:$0xff] %v1204
        %1273 = vst [vmem:[%s256 + $0x198] sm:$0xff] %v1206
        %1274 = vst [vmem:[%s256 + $0x1a0] sm:$0xff] %v982
        %1275 = vst [vmem:[%s256 + $0x1a8] sm:$0xff] %v984
        %1276 = vst [vmem:[%s256 + $0x1b0] sm:$0xff] %v1208
        %1277 = vst [vmem:[%s256 + $0x1b8] sm:$0xff] %v1210
        %1278 = vst [vmem:[%s256 + $0x1c0] sm:$0xff] %v988
        %1279 = vst [vmem:[%s256 + $0x1c8] sm:$0xff] %v990
        %1280 = vst [vmem:[%s256 + $0x1d0] sm:$0xff] %v1214
        %1281 = vst [vmem:[%s256 + $0x1d8] sm:$0xff] %v1216
        %1282 = vst [vmem:[%s256 + $0x1e0] sm:$0xff] %v992
        %1283 = vst [vmem:[%s256 + $0x1e8] sm:$0xff] %v994
        %1284 = vst [vmem:[%s256 + $0x1f0] sm:$0xff] %v1218
        %1285 = vst [vmem:[%s256 + $0x1f8] sm:$0xff] %v1220
        %s1286 = sand.u32 %s132, 1
        %s1287 = scalar_lea.sflag [#allocation4], %s1286
        %s1288 = sand.u32 %s132, 1
        %s1289 = smul.addr %s1288, 512
        %s1290 = scalar_lea.vmem [#allocation7], %s1289
        // Predicated region
        $region41: #{data_parallel_linear.1} parent=31 // pred_check
          %p1291 = pneg %p142
        $region42: #{data_parallel_linear.1} parent=31 // pred_check_branch
          %1293 = sbr.rel (%p1291) target = $region44
        $region43: #{data_parallel_linear.1} parent=31 // pred_region
          %s1294 = smul.u32 16, %s26
          %s1295 = smul.u32 4, %s27
          %s1297 = ssub.s32 8192, 8192
          %1298 = vsyncadd %s1287, %s1297
          %s1299 = smul.addr %s1294, 4
          %s1300 = sadd.s32 %s1295, %s1299
          %s1301 = smul.addr %s1300, 128
          %s1302 = scalar_lea.hbm %s3, %s1301
          %s1303 = sshll.u32 %s1290, 4
          %s1304 = int_to_ptr.vmem [resolvable:$true] %s1303
          %1309 = dma.vmem_to_hbm [thread:$0]  %s1304, 8192, %s1302, %s1287, 512, 512, 32
        $region44: #{data_parallel_linear.1} parent=31 // pred_fallthru
          _
      $region32: #{data_parallel_linear.1} parent=5 // pred_fallthru
        _
      %p1310 = scmp.le.s32.totalorder 2, %s16
      // Predicated region
      $region45: #{data_parallel_linear.1} parent=5 // pred_check
        %p1311 = pneg %p1310
      $region46: #{data_parallel_linear.1} parent=5 // pred_check_branch
        %1313 = sbr.rel (%p1311) target = $region48
      $region47: #{data_parallel_linear.1} parent=5 // pred_region
        %s1314 = ssub.s32 %s16, 2
        // Predicated region
        $region49: #{data_parallel_linear.1} parent=47 // pred_check
          %p1315 = pneg %p148
        $region50: #{data_parallel_linear.1} parent=47 // pred_check_branch
          %1317 = sbr.rel (%p1315) target = $region52
        $region51: #{data_parallel_linear.1} parent=47 // pred_region
          %s1318 = sand.u32 %s133, 1
          %s1319 = scalar_lea.sflag [#allocation4], %s1318
          %s1320 = sand.u32 %s133, 1
          %s1321 = smul.addr %s1320, 512
          %s1322 = scalar_lea.vmem [#allocation7], %s1321
          %1323 = dma.done %s1319, 8192
        $region52: #{data_parallel_linear.1} parent=47 // pred_fallthru
          _
      $region48: #{data_parallel_linear.1} parent=5 // pred_fallthru
        _
    $region6: #{data_parallel_linear.1} parent=1 // loop_footer
      %s20 = sadd.s32 1, %s16
    $region7: #{data_parallel_linear.1} parent=1 // loop_footer_branch
      %15 = sbr.rel target = $region3
    $region8: #{data_parallel_linear.1} parent=1 // loop_exit
      _
    %1324 = vsyncpa [#allocation3], 1
    %s1325 = scalar_lea.sflag [#allocation3], 1
    %1326 = vsyncpa %s1325, 1
    %1327 = vsyncpa [#allocation6], 1
    %1328 = vsyncpa [#allocation4], 1
    %s1329 = scalar_lea.sflag [#allocation4], 1
    %1330 = vsyncpa %s1329, 1

</llo_original>
